<compile_context>
chip_gen: v7x
topology: tpu7x:2x2x1
jax: 0.10.0
libtpu: 0.0.40
codegen_flags: <defaults>
</compile_context>

<pallas_src>
import jax
import jax.numpy as jnp
import numpy as np
from jax.experimental import pallas as pl
from jax.experimental.pallas import tpu as pltpu

BN_EPS = 1e-5


# ----------------------------------------------------------------------------
# Fused Pallas kernel: grid step l == one SmoothConvLayerNew + BN + residual
# ----------------------------------------------------------------------------
def fused_block_kernel(h_ref, e_ref, sd_ref, dt_ref, w32_ref, wsd_ref, b_ref,
                       out_ref):
    N, F = out_ref.shape
    E, De = e_ref.shape
    H = wsd_ref.shape[1] // 2

    l = pl.program_id(0)

    # Node features are carried in the resident output block across layers.
    @pl.when(l == 0)
    def _():
        out_ref[...] = h_ref[...]

    h = out_ref[...]                                        # (N, F) f32

    # --- BatchNorm1d (batch statistics, biased variance) -- f32 / VPU -------
    b = b_ref[...]                                          # (8, F) bias slab
    gamma, beta = b[0:1, :], b[1:2, :]
    mean = jnp.sum(h, axis=0, keepdims=True) * (1.0 / N)
    hm = h - mean
    var = jnp.sum(hm * hm, axis=0, keepdims=True) * (1.0 / N)
    x = hm * jax.lax.rsqrt(var + BN_EPS) * gamma + beta
    xb = x.astype(jnp.bfloat16)

    # --- src/dst affine projected on the N nodes (merged), then gathered ----
    xproj = jnp.dot(xb, wsd_ref[...],                       # (N, 2H)
                    preferred_element_type=jnp.float32)
    xcat = jnp.concatenate([xb, xproj.astype(jnp.bfloat16)], axis=1)  # (N, F+2H)
    # ONE matmul gathers both endpoints: [S; D] (2E, N) @ xcat
    g = jnp.dot(sd_ref[...], xcat, preferred_element_type=jnp.float32)
    hs = g[:E, :F]                                          # src node feats (E, F)
    src_code = g[:E, F:F + H]                               # src_affine(x)[src]
    dst_code = g[E:, F + H:]                                # dst_affine(x)[dst]

    # --- edge_affine MLP: Linear -> ReLU -> Linear ---------------------------
    we1 = w32_ref[0:De, :]                                  # (De, H)
    we2 = w32_ref[De:De + H, :]                             # (H, H)
    be1, bsum = b[2:3, :], b[3:4, :]                        # bsum = be2+bsrc+bdst
    ec = jnp.maximum(
        jnp.dot(e_ref[...], we1, preferred_element_type=jnp.float32) + be1, 0.0)
    edge_code = jnp.dot(ec.astype(jnp.bfloat16), we2,
                        preferred_element_type=jnp.float32)            # (E, H)

    # --- theta_edge MLP: ReLU -> Linear -> ReLU -> Linear --------------------
    wt1 = w32_ref[De + H:De + 2 * H, :]
    wt2 = w32_ref[De + 2 * H:De + 3 * H, :]
    bt1, bt2 = b[4:5, :], b[5:6, :]
    t = jnp.maximum(edge_code + src_code + dst_code + bsum, 0.0)
    t = jnp.maximum(
        jnp.dot(t.astype(jnp.bfloat16), wt1,
                preferred_element_type=jnp.float32) + bt1, 0.0)
    e_emb = jnp.dot(t.astype(jnp.bfloat16), wt2,
                    preferred_element_type=jnp.float32) + bt2          # (E, F)

    # --- message passing: u_mul_e + sum-scatter onto dst nodes ---------------
    m = (hs * e_emb).astype(jnp.bfloat16)                               # (E, F)
    agg = jnp.dot(dt_ref[...], m, preferred_element_type=jnp.float32)   # (N, F)

    # --- phi( phi_dst(x) + phi_edge(agg) ): merged Linear, ReLU, Linear ------
    wphi = w32_ref[De + 3 * H:De + 4 * H, :]                # (H, F)
    wpde = w32_ref[De + 4 * H:De + 4 * H + 2 * F, :]        # (2F, H) = [wpd; wpe]
    bpde, bphi = b[6:7, :], b[7:8, :]                       # bpde = bpd + bpe
    xa = jnp.concatenate([xb, agg.astype(jnp.bfloat16)], axis=1)        # (N, 2F)
    z = jnp.maximum(
        jnp.dot(xa, wpde, preferred_element_type=jnp.float32) + bpde, 0.0)
    out = jnp.dot(z.astype(jnp.bfloat16), wphi,
                  preferred_element_type=jnp.float32) + bphi            # (N, F)

    # --- block residual; carry stays in VMEM for the next layer --------------
    out_ref[...] = out + h


# ----------------------------------------------------------------------------
# Parameter packing (one-time preprocessing) + fused wrapper
# ----------------------------------------------------------------------------
def _pack_layer_params(layer_params):
    w32s, wsds, bs = [], [], []
    for p in layer_params:
        (gamma, beta, we1, be1, we2, be2, wsrc, bsrc, wdst, bdst,
         wt1, bt1, wt2, bt2, wpd, bpd, wpe, bpe, wphi, bphi) = p
        # Row-stacked weight slab: [we1; we2; wt1; wt2; wphi; wpd; wpe]
        w32s.append(jnp.concatenate([we1, we2, wt1, wt2, wphi, wpd, wpe], axis=0))
        # Horizontally merged src/dst affine: x @ [wsrc | wdst]
        wsds.append(jnp.concatenate([wsrc, wdst], axis=1))
        # Bias slab (8 rows): [gamma, beta, be1, be2+bsrc+bdst, bt1, bt2,
        #                      bpd+bpe, bphi]
        bs.append(jnp.concatenate(
            [gamma, beta, be1, be2 + bsrc + bdst, bt1, bt2, bpd + bpe, bphi],
            axis=0))
    W32 = jnp.stack(w32s).astype(jnp.bfloat16)   # (L, De+4H+2F, 32)
    WSD = jnp.stack(wsds).astype(jnp.bfloat16)   # (L, F, 2H)
    B = jnp.stack(bs).astype(jnp.float32)        # (L, 8, F)
    return W32, WSD, B


@jax.jit
def smooth_conv_block(h, e, S, D, layer_params):
    N, F = h.shape
    E, De = e.shape
    L = len(layer_params)

    W32, WSD, B = _pack_layer_params(layer_params)
    SD = jnp.concatenate([S, D], axis=0).astype(jnp.bfloat16)   # (2E, N) gather
    DT = D.T.astype(jnp.bfloat16)                               # (N, E)  scatter
    eb = e.astype(jnp.bfloat16)

    shared = lambda l: (0, 0)        # same block every layer -> fetched once
    per_layer = lambda l: (l, 0, 0)  # per-layer parameter slab

    return pl.pallas_call(
        fused_block_kernel,
        grid=(L,),
        in_specs=[
            pl.BlockSpec((N, F), shared),                       # h (f32)
            pl.BlockSpec((E, De), shared),                      # edge feats
            pl.BlockSpec((2 * E, N), shared),                   # [S; D]
            pl.BlockSpec((N, E), shared),                       # D^T
            pl.BlockSpec((None,) + W32.shape[1:], per_layer),   # weight slab
            pl.BlockSpec((None,) + WSD.shape[1:], per_layer),   # [wsrc|wdst]
            pl.BlockSpec((None,) + B.shape[1:], per_layer),     # bias slab
        ],
        out_specs=pl.BlockSpec((N, F), shared),
        out_shape=jax.ShapeDtypeStruct((N, F), jnp.float32),
        compiler_params=pltpu.CompilerParams(
            dimension_semantics=("arbitrary",)),                # layer carry
    )(h, eb, SD, DT, W32, WSD, B)


# ----------------------------------------------------------------------------
# Pure-JAX float32 reference (mirrors the PyTorch module semantics)
# ----------------------------------------------------------------------------
def ref_layer(h, e, S, D, p):
    (gamma, beta, we1, be1, we2, be2, wsrc, bsrc, wdst, bdst,
     wt1, bt1, wt2, bt2, wpd, bpd, wpe, bpe, wphi, bphi) = p
    mean = h.mean(0, keepdims=True)
    var = ((h - mean) ** 2).mean(0, keepdims=True)
    x = (h - mean) / jnp.sqrt(var + BN_EPS) * gamma + beta
    edge_code = jnp.maximum(e @ we1 + be1, 0.0) @ we2 + be2
    hs, hd = S @ x, D @ x
    t = edge_code + (hs @ wsrc + bsrc) + (hd @ wdst + bdst)
    e_emb = jnp.maximum(jnp.maximum(t, 0.0) @ wt1 + bt1, 0.0) @ wt2 + bt2
    agg = D.T @ (hs * e_emb)
    z = jnp.maximum(x @ wpd + bpd + agg @ wpe + bpe, 0.0)
    return z @ wphi + bphi + h


def ref_block(h, e, S, D, layer_params):
    for p in layer_params:
        h = ref_layer(h, e, S, D, p)
    return h


# ----------------------------------------------------------------------------
# Deterministic parameter init (PyTorch nn.Linear default U(-1/sqrt(fan_in),.))
# ----------------------------------------------------------------------------
def init_linear(key, fan_in, fan_out):
    kw, kb = jax.random.split(key)
    bound = 1.0 / np.sqrt(fan_in)
    w = jax.random.uniform(kw, (fan_in, fan_out), jnp.float32, -bound, bound)
    b = jax.random.uniform(kb, (1, fan_out), jnp.float32, -bound, bound)
    return w, b


def init_layer_params(key, F, H, De):
    keys = jax.random.split(key, 10)
    gamma = jnp.ones((1, F), jnp.float32)       # BatchNorm1d weight
    beta = jnp.zeros((1, F), jnp.float32)       # BatchNorm1d bias
    we1, be1 = init_linear(keys[0], De, H)      # edge_affine[0]
    we2, be2 = init_linear(keys[1], H, H)       # edge_affine[2]
    wsrc, bsrc = init_linear(keys[2], F, H)     # src_affine
    wdst, bdst = init_linear(keys[3], F, H)     # dst_affine
    wt1, bt1 = init_linear(keys[4], H, H)       # theta_edge[1]
    wt2, bt2 = init_linear(keys[5], H, F)       # theta_edge[3]
    wpd, bpd = init_linear(keys[6], F, H)       # phi_dst
    wpe, bpe = init_linear(keys[7], F, H)       # phi_edge
    wphi, bphi = init_linear(keys[8], H, F)     # phi[1]
    return (gamma, beta, we1, be1, we2, be2, wsrc, bsrc, wdst, bdst,
            wt1, bt1, wt2, bt2, wpd, bpd, wpe, bpe, wphi, bphi)


if __name__ == "__main__":
    # in_node_feats = out_node_feats = 32 (residual requires equality),
    # hidden_dim = 32, edge_emb_dim = 16, conv_layer = 3.
    N, E, F, H, De, L = 16, 48, 32, 32, 16, 3

    key = jax.random.PRNGKey(0)
    k_h, k_e, k_src, k_dst, k_p = jax.random.split(key, 5)

    h = jax.random.normal(k_h, (N, F), jnp.float32)
    edge_feat = jax.random.normal(k_e, (E, De), jnp.float32)
    src_idx = jax.random.randint(k_src, (E,), 0, N)
    dst_idx = jax.random.randint(k_dst, (E,), 0, N)

    # dense one-hot gather / scatter operators (glue)
    S = jax.nn.one_hot(src_idx, N, dtype=jnp.float32)    # (E, N) gather src
    D = jax.nn.one_hot(dst_idx, N, dtype=jnp.float32)    # (E, N) gather dst

    layer_params = [init_layer_params(k, F, H, De)
                    for k in jax.random.split(k_p, L)]

    out = smooth_conv_block(h, edge_feat, S, D, layer_params)
    out = jax.block_until_ready(out)

    ref = ref_block(h, edge_feat, S, D, layer_params)
    # Slightly widened tolerance: MXU operands are bf16 (f32 accumulation),
    # reference is pure f32 across the 3-layer residual chain.
    np.testing.assert_allclose(np.asarray(out), np.asarray(ref),
                               rtol=3e-2, atol=3e-2)

    print("KERNEL_OK")
</pallas_src>

<mosaic_0001>
module attributes {stable_mosaic.version = 11 : i64} {
  func.func @fused_block_kernel(%arg0: i32, %arg1: memref<16x32xf32, #tpu.memory_space<vmem>>, %arg2: memref<48x16xbf16, #tpu.memory_space<vmem>>, %arg3: memref<96x16xbf16, #tpu.memory_space<vmem>>, %arg4: memref<16x48xbf16, #tpu.memory_space<vmem>>, %arg5: memref<1x208x32xbf16, #tpu.memory_space<vmem>>, %arg6: memref<1x32x64xbf16, #tpu.memory_space<vmem>>, %arg7: memref<1x8x32xf32, #tpu.memory_space<vmem>>, %arg8: memref<16x32xf32, #tpu.memory_space<vmem>>) attributes {dimension_semantics = [#tpu.dimension_semantics<arbitrary>], iteration_bounds = array<i64: 3>, scalar_prefetch = 0 : i64, scratch_operands = 0 : i64, tpu.core_type = #tpu.core_type<tc>, window_params = [{pipeline_mode = #tpu.pipeline_mode<synchronous>, transform_indices = @transform_0, window_bounds = array<i64: 16, 32>}, {pipeline_mode = #tpu.pipeline_mode<synchronous>, transform_indices = @transform_1, window_bounds = array<i64: 48, 16>}, {pipeline_mode = #tpu.pipeline_mode<synchronous>, transform_indices = @transform_2, window_bounds = array<i64: 96, 16>}, {pipeline_mode = #tpu.pipeline_mode<synchronous>, transform_indices = @transform_3, window_bounds = array<i64: 16, 48>}, {transform_indices = @transform_4, window_bounds = array<i64: 1, 208, 32>}, {transform_indices = @transform_5, window_bounds = array<i64: 1, 32, 64>}, {transform_indices = @transform_6, window_bounds = array<i64: 1, 8, 32>}, {pipeline_mode = #tpu.pipeline_mode<synchronous>, transform_indices = @transform_7, window_bounds = array<i64: 16, 32>}]} {
    %c0_i32 = arith.constant 0 : i32
    %0 = arith.cmpi eq, %arg0, %c0_i32 : i32
    %1 = arith.extui %0 : i1 to i32
    %c0_i32_0 = arith.constant 0 : i32
    %2 = arith.cmpi ne, %1, %c0_i32_0 : i32
    scf.if %2 {
      %c0_46 = arith.constant 0 : index
      %c0_47 = arith.constant 0 : index
      %98 = vector.load %arg1[%c0_46, %c0_47] : memref<16x32xf32, #tpu.memory_space<vmem>>, vector<16x32xf32>
      %c0_48 = arith.constant 0 : index
      %c0_49 = arith.constant 0 : index
      %99 = vector.load %arg8[%c0_48, %c0_49] : memref<16x32xf32, #tpu.memory_space<vmem>>, vector<16x32xf32>
      tpu.vector_store %arg8[%c0_48, %c0_49], %98 {strides = array<i32>} : memref<16x32xf32, #tpu.memory_space<vmem>>, vector<16x32xf32>,
    } else {
    }
    %c0 = arith.constant 0 : index
    %c0_1 = arith.constant 0 : index
    %3 = vector.load %arg8[%c0, %c0_1] : memref<16x32xf32, #tpu.memory_space<vmem>>, vector<16x32xf32>
    %c0_2 = arith.constant 0 : index
    %c0_3 = arith.constant 0 : index
    %c0_4 = arith.constant 0 : index
    %4 = vector.load %arg7[%c0_2, %c0_3, %c0_4] : memref<1x8x32xf32, #tpu.memory_space<vmem>>, vector<1x8x32xf32>
    %5 = vector.shape_cast %4 : vector<1x8x32xf32> to vector<8x32xf32>
    %6 = vector.extract_strided_slice %5 {offsets = [0, 0], sizes = [1, 32], strides = [1, 1]} : vector<8x32xf32> to vector<1x32xf32>
    %7 = vector.extract_strided_slice %5 {offsets = [1, 0], sizes = [1, 32], strides = [1, 1]} : vector<8x32xf32> to vector<1x32xf32>
    %cst = arith.constant dense<0.000000e+00> : vector<32xf32>
    %8 = vector.multi_reduction <add>, %3, %cst [0] : vector<16x32xf32> to vector<32xf32>
    %9 = vector.shape_cast %8 : vector<32xf32> to vector<1x32xf32>
    %cst_5 = arith.constant 6.250000e-02 : f32
    %10 = vector.broadcast %cst_5 : f32 to vector<1x32xf32>
    %11 = arith.mulf %9, %10 : vector<1x32xf32>
    %12 = vector.broadcast %11 : vector<1x32xf32> to vector<16x32xf32>
    %13 = arith.subf %3, %12 : vector<16x32xf32>
    %14 = arith.mulf %13, %13 : vector<16x32xf32>
    %cst_6 = arith.constant dense<0.000000e+00> : vector<32xf32>
    %15 = vector.multi_reduction <add>, %14, %cst_6 [0] : vector<16x32xf32> to vector<32xf32>
    %16 = vector.shape_cast %15 : vector<32xf32> to vector<1x32xf32>
    %cst_7 = arith.constant 6.250000e-02 : f32
    %17 = vector.broadcast %cst_7 : f32 to vector<1x32xf32>
    %18 = arith.mulf %16, %17 : vector<1x32xf32>
    %cst_8 = arith.constant 9.99999974E-6 : f32
    %19 = vector.broadcast %cst_8 : f32 to vector<1x32xf32>
    %20 = arith.addf %18, %19 : vector<1x32xf32>
    %21 = math.rsqrt %20 : vector<1x32xf32>
    %22 = vector.broadcast %21 : vector<1x32xf32> to vector<16x32xf32>
    %23 = arith.mulf %13, %22 : vector<16x32xf32>
    %24 = vector.broadcast %6 : vector<1x32xf32> to vector<16x32xf32>
    %25 = arith.mulf %23, %24 : vector<16x32xf32>
    %26 = vector.broadcast %7 : vector<1x32xf32> to vector<16x32xf32>
    %27 = arith.addf %25, %26 : vector<16x32xf32>
    %28 = arith.truncf %27 : vector<16x32xf32> to vector<16x32xbf16>
    %c0_9 = arith.constant 0 : index
    %c0_10 = arith.constant 0 : index
    %c0_11 = arith.constant 0 : index
    %29 = vector.load %arg6[%c0_9, %c0_10, %c0_11] : memref<1x32x64xbf16, #tpu.memory_space<vmem>>, vector<1x32x64xbf16>
    %30 = vector.shape_cast %29 : vector<1x32x64xbf16> to vector<32x64xbf16>
    %cst_12 = arith.constant dense<0.000000e+00> : vector<16x64xf32>
    %31 = tpu.matmul %28, %30, %cst_12 {dimension_numbers = #tpu.dot_dimension_numbers<[1], [0], [0], [1], [0, 0, 1, 1], [], []>} : vector<16x32xbf16>, vector<32x64xbf16>, vector<16x64xf32> -> vector<16x64xf32>
    %32 = arith.truncf %31 : vector<16x64xf32> to vector<16x64xbf16>
    %33 = tpu.concatenate %28, %32 in 1 : vector<16x32xbf16>, vector<16x64xbf16> -> vector<16x96xbf16>
    %c0_13 = arith.constant 0 : index
    %c0_14 = arith.constant 0 : index
    %34 = vector.load %arg3[%c0_13, %c0_14] : memref<96x16xbf16, #tpu.memory_space<vmem>>, vector<96x16xbf16>
    %cst_15 = arith.constant dense<0.000000e+00> : vector<96x96xf32>
    %35 = tpu.matmul %34, %33, %cst_15 {dimension_numbers = #tpu.dot_dimension_numbers<[1], [0], [0], [1], [0, 0, 1, 1], [], []>} : vector<96x16xbf16>, vector<16x96xbf16>, vector<96x96xf32> -> vector<96x96xf32>
    %36 = vector.extract_strided_slice %35 {offsets = [0, 0], sizes = [48, 32], strides = [1, 1]} : vector<96x96xf32> to vector<48x32xf32>
    %37 = vector.extract_strided_slice %35 {offsets = [0, 32], sizes = [48, 32], strides = [1, 1]} : vector<96x96xf32> to vector<48x32xf32>
    %38 = vector.extract_strided_slice %35 {offsets = [48, 64], sizes = [48, 32], strides = [1, 1]} : vector<96x96xf32> to vector<48x32xf32>
    %c0_16 = arith.constant 0 : index
    %c0_17 = arith.constant 0 : index
    %c0_18 = arith.constant 0 : index
    %39 = vector.load %arg5[%c0_16, %c0_17, %c0_18] : memref<1x208x32xbf16, #tpu.memory_space<vmem>>, vector<1x16x32xbf16>
    %40 = vector.shape_cast %39 : vector<1x16x32xbf16> to vector<16x32xbf16>
    %c0_19 = arith.constant 0 : index
    %c16 = arith.constant 16 : index
    %c0_20 = arith.constant 0 : index
    %41 = vector.load %arg5[%c0_19, %c16, %c0_20] : memref<1x208x32xbf16, #tpu.memory_space<vmem>>, vector<1x32x32xbf16>
    %42 = vector.shape_cast %41 : vector<1x32x32xbf16> to vector<32x32xbf16>
    %43 = vector.extract_strided_slice %5 {offsets = [2, 0], sizes = [1, 32], strides = [1, 1]} : vector<8x32xf32> to vector<1x32xf32>
    %44 = vector.extract_strided_slice %5 {offsets = [3, 0], sizes = [1, 32], strides = [1, 1]} : vector<8x32xf32> to vector<1x32xf32>
    %c0_21 = arith.constant 0 : index
    %c0_22 = arith.constant 0 : index
    %45 = vector.load %arg2[%c0_21, %c0_22] : memref<48x16xbf16, #tpu.memory_space<vmem>>, vector<48x16xbf16>
    %cst_23 = arith.constant dense<0.000000e+00> : vector<48x32xf32>
    %46 = tpu.matmul %45, %40, %cst_23 {dimension_numbers = #tpu.dot_dimension_numbers<[1], [0], [0], [1], [0, 0, 1, 1], [], []>} : vector<48x16xbf16>, vector<16x32xbf16>, vector<48x32xf32> -> vector<48x32xf32>
    %47 = vector.broadcast %43 : vector<1x32xf32> to vector<48x32xf32>
    %48 = arith.addf %46, %47 : vector<48x32xf32>
    %cst_24 = arith.constant 0.000000e+00 : f32
    %49 = vector.broadcast %cst_24 : f32 to vector<48x32xf32>
    %50 = arith.maximumf %48, %49 : vector<48x32xf32>
    %51 = arith.truncf %50 : vector<48x32xf32> to vector<48x32xbf16>
    %cst_25 = arith.constant dense<0.000000e+00> : vector<48x32xf32>
    %52 = tpu.matmul %51, %42, %cst_25 {dimension_numbers = #tpu.dot_dimension_numbers<[1], [0], [0], [1], [0, 0, 1, 1], [], []>} : vector<48x32xbf16>, vector<32x32xbf16>, vector<48x32xf32> -> vector<48x32xf32>
    %c0_26 = arith.constant 0 : index
    %c48 = arith.constant 48 : index
    %c0_27 = arith.constant 0 : index
    %53 = vector.load %arg5[%c0_26, %c48, %c0_27] : memref<1x208x32xbf16, #tpu.memory_space<vmem>>, vector<1x32x32xbf16>
    %54 = vector.shape_cast %53 : vector<1x32x32xbf16> to vector<32x32xbf16>
    %c0_28 = arith.constant 0 : index
    %c80 = arith.constant 80 : index
    %c0_29 = arith.constant 0 : index
    %55 = vector.load %arg5[%c0_28, %c80, %c0_29] : memref<1x208x32xbf16, #tpu.memory_space<vmem>>, vector<1x32x32xbf16>
    %56 = vector.shape_cast %55 : vector<1x32x32xbf16> to vector<32x32xbf16>
    %57 = vector.extract_strided_slice %5 {offsets = [4, 0], sizes = [1, 32], strides = [1, 1]} : vector<8x32xf32> to vector<1x32xf32>
    %58 = vector.extract_strided_slice %5 {offsets = [5, 0], sizes = [1, 32], strides = [1, 1]} : vector<8x32xf32> to vector<1x32xf32>
    %59 = arith.addf %52, %37 : vector<48x32xf32>
    %60 = arith.addf %59, %38 : vector<48x32xf32>
    %61 = vector.broadcast %44 : vector<1x32xf32> to vector<48x32xf32>
    %62 = arith.addf %60, %61 : vector<48x32xf32>
    %cst_30 = arith.constant 0.000000e+00 : f32
    %63 = vector.broadcast %cst_30 : f32 to vector<48x32xf32>
    %64 = arith.maximumf %62, %63 : vector<48x32xf32>
    %65 = arith.truncf %64 : vector<48x32xf32> to vector<48x32xbf16>
    %cst_31 = arith.constant dense<0.000000e+00> : vector<48x32xf32>
    %66 = tpu.matmul %65, %54, %cst_31 {dimension_numbers = #tpu.dot_dimension_numbers<[1], [0], [0], [1], [0, 0, 1, 1], [], []>} : vector<48x32xbf16>, vector<32x32xbf16>, vector<48x32xf32> -> vector<48x32xf32>
    %67 = vector.broadcast %57 : vector<1x32xf32> to vector<48x32xf32>
    %68 = arith.addf %66, %67 : vector<48x32xf32>
    %cst_32 = arith.constant 0.000000e+00 : f32
    %69 = vector.broadcast %cst_32 : f32 to vector<48x32xf32>
    %70 = arith.maximumf %68, %69 : vector<48x32xf32>
    %71 = arith.truncf %70 : vector<48x32xf32> to vector<48x32xbf16>
    %cst_33 = arith.constant dense<0.000000e+00> : vector<48x32xf32>
    %72 = tpu.matmul %71, %56, %cst_33 {dimension_numbers = #tpu.dot_dimension_numbers<[1], [0], [0], [1], [0, 0, 1, 1], [], []>} : vector<48x32xbf16>, vector<32x32xbf16>, vector<48x32xf32> -> vector<48x32xf32>
    %73 = vector.broadcast %58 : vector<1x32xf32> to vector<48x32xf32>
    %74 = arith.addf %72, %73 : vector<48x32xf32>
    %75 = arith.mulf %36, %74 : vector<48x32xf32>
    %76 = arith.truncf %75 : vector<48x32xf32> to vector<48x32xbf16>
    %c0_34 = arith.constant 0 : index
    %c0_35 = arith.constant 0 : index
    %77 = vector.load %arg4[%c0_34, %c0_35] : memref<16x48xbf16, #tpu.memory_space<vmem>>, vector<16x48xbf16>
    %cst_36 = arith.constant dense<0.000000e+00> : vector<16x32xf32>
    %78 = tpu.matmul %77, %76, %cst_36 {dimension_numbers = #tpu.dot_dimension_numbers<[1], [0], [0], [1], [0, 0, 1, 1], [], []>} : vector<16x48xbf16>, vector<48x32xbf16>, vector<16x32xf32> -> vector<16x32xf32>
    %c0_37 = arith.constant 0 : index
    %c112 = arith.constant 112 : index
    %c0_38 = arith.constant 0 : index
    %79 = vector.load %arg5[%c0_37, %c112, %c0_38] : memref<1x208x32xbf16, #tpu.memory_space<vmem>>, vector<1x32x32xbf16>
    %80 = vector.shape_cast %79 : vector<1x32x32xbf16> to vector<32x32xbf16>
    %c0_39 = arith.constant 0 : index
    %c144 = arith.constant 144 : index
    %c0_40 = arith.constant 0 : index
    %81 = vector.load %arg5[%c0_39, %c144, %c0_40] : memref<1x208x32xbf16, #tpu.memory_space<vmem>>, vector<1x64x32xbf16>
    %82 = vector.shape_cast %81 : vector<1x64x32xbf16> to vector<64x32xbf16>
    %83 = vector.extract_strided_slice %5 {offsets = [6, 0], sizes = [1, 32], strides = [1, 1]} : vector<8x32xf32> to vector<1x32xf32>
    %84 = vector.extract_strided_slice %5 {offsets = [7, 0], sizes = [1, 32], strides = [1, 1]} : vector<8x32xf32> to vector<1x32xf32>
    %85 = arith.truncf %78 : vector<16x32xf32> to vector<16x32xbf16>
    %86 = tpu.concatenate %28, %85 in 1 : vector<16x32xbf16>, vector<16x32xbf16> -> vector<16x64xbf16>
    %cst_41 = arith.constant dense<0.000000e+00> : vector<16x32xf32>
    %87 = tpu.matmul %86, %82, %cst_41 {dimension_numbers = #tpu.dot_dimension_numbers<[1], [0], [0], [1], [0, 0, 1, 1], [], []>} : vector<16x64xbf16>, vector<64x32xbf16>, vector<16x32xf32> -> vector<16x32xf32>
    %88 = vector.broadcast %83 : vector<1x32xf32> to vector<16x32xf32>
    %89 = arith.addf %87, %88 : vector<16x32xf32>
    %cst_42 = arith.constant 0.000000e+00 : f32
    %90 = vector.broadcast %cst_42 : f32 to vector<16x32xf32>
    %91 = arith.maximumf %89, %90 : vector<16x32xf32>
    %92 = arith.truncf %91 : vector<16x32xf32> to vector<16x32xbf16>
    %cst_43 = arith.constant dense<0.000000e+00> : vector<16x32xf32>
    %93 = tpu.matmul %92, %80, %cst_43 {dimension_numbers = #tpu.dot_dimension_numbers<[1], [0], [0], [1], [0, 0, 1, 1], [], []>} : vector<16x32xbf16>, vector<32x32xbf16>, vector<16x32xf32> -> vector<16x32xf32>
    %94 = vector.broadcast %84 : vector<1x32xf32> to vector<16x32xf32>
    %95 = arith.addf %93, %94 : vector<16x32xf32>
    %96 = arith.addf %95, %3 : vector<16x32xf32>
    %c0_44 = arith.constant 0 : index
    %c0_45 = arith.constant 0 : index
    %97 = vector.load %arg8[%c0_44, %c0_45] : memref<16x32xf32, #tpu.memory_space<vmem>>, vector<16x32xf32>
    tpu.vector_store %arg8[%c0_44, %c0_45], %96 {strides = array<i32>} : memref<16x32xf32, #tpu.memory_space<vmem>>, vector<16x32xf32>,
    return
  }
  func.func @transform_0(%arg0: i32) -> (i32, i32) {
    %c0_i32 = arith.constant 0 : i32
    %c0_i32_0 = arith.constant 0 : i32
    %c0_i32_1 = arith.constant 0 : i32
    return %c0_i32, %c0_i32_0 : i32, i32
  }
  func.func @transform_1(%arg0: i32) -> (i32, i32) {
    %c0_i32 = arith.constant 0 : i32
    %c0_i32_0 = arith.constant 0 : i32
    %c0_i32_1 = arith.constant 0 : i32
    return %c0_i32, %c0_i32_0 : i32, i32
  }
  func.func @transform_2(%arg0: i32) -> (i32, i32) {
    %c0_i32 = arith.constant 0 : i32
    %c0_i32_0 = arith.constant 0 : i32
    %c0_i32_1 = arith.constant 0 : i32
    return %c0_i32, %c0_i32_0 : i32, i32
  }
  func.func @transform_3(%arg0: i32) -> (i32, i32) {
    %c0_i32 = arith.constant 0 : i32
    %c0_i32_0 = arith.constant 0 : i32
    %c0_i32_1 = arith.constant 0 : i32
    return %c0_i32, %c0_i32_0 : i32, i32
  }
  func.func @transform_4(%arg0: i32) -> (i32, i32, i32) {
    %c0_i32 = arith.constant 0 : i32
    %c0_i32_0 = arith.constant 0 : i32
    %c0_i32_1 = arith.constant 0 : i32
    return %arg0, %c0_i32, %c0_i32_0 : i32, i32, i32
  }
  func.func @transform_5(%arg0: i32) -> (i32, i32, i32) {
    %c0_i32 = arith.constant 0 : i32
    %c0_i32_0 = arith.constant 0 : i32
    %c0_i32_1 = arith.constant 0 : i32
    return %arg0, %c0_i32, %c0_i32_0 : i32, i32, i32
  }
  func.func @transform_6(%arg0: i32) -> (i32, i32, i32) {
    %c0_i32 = arith.constant 0 : i32
    %c0_i32_0 = arith.constant 0 : i32
    %c0_i32_1 = arith.constant 0 : i32
    return %arg0, %c0_i32, %c0_i32_0 : i32, i32, i32
  }
  func.func @transform_7(%arg0: i32) -> (i32, i32) {
    %c0_i32 = arith.constant 0 : i32
    %c0_i32_0 = arith.constant 0 : i32
    %c0_i32_1 = arith.constant 0 : i32
    return %c0_i32, %c0_i32_0 : i32, i32
  }
}

</mosaic_0001>

<llo_original>
// kernel: smooth_conv_block.1
$region0: #{smooth_conv_block.1}
  #allocation0 [shape = 'u32[]', space=smem, size = 0x4, offset = 0x4, fixed_abs, tag = 'smem constant byte address 0x4 - core index']
  #allocation1 [shape = 'u32[144,128]{1,0:T(1,128)}', space=vmem, size = 0x12000, scoped, tag = 'internal scratch']
  %s0 = inlined_call_operand.vmem [shape: f32[16,32], index: 0, kind: input, shape index: {}]
  %s1 = inlined_call_operand.vmem [shape: bf16[48,16], index: 1, kind: input, shape index: {}]
  %s2 = inlined_call_operand.vmem [shape: bf16[96,16], index: 2, kind: input, shape index: {}]
  %s3 = inlined_call_operand.vmem [shape: bf16[16,48], index: 3, kind: input, shape index: {}]
  %s4 = inlined_call_operand.vmem [shape: bf16[3,208,32], index: 4, kind: input, shape index: {}]
  %s5 = inlined_call_operand.vmem [shape: bf16[3,32,64], index: 5, kind: input, shape index: {}]
  %s6 = inlined_call_operand.vmem [shape: f32[3,8,32], index: 6, kind: input, shape index: {}]
  %s7 = inlined_call_operand.hbm [shape: f32[16,32], index: 7, kind: output, shape index: {}]
  %s8 = sld [smem:[#allocation0]]
  $region65: #{smooth_conv_block.1} parent=0
    _
  %s10 = ssub.s32 1, %s8
  %s11 = scalar_select 0, %s10, %s8
  $region1: #{smooth_conv_block.1} parent=0
    #allocation2 [shape = 'u8[8192]{0}', space=vmem, size = 0x2000, scoped, tag = 'output window, operand 0, single buffered']
    #allocation3 [shape = 's32[2]{0}', space=sflag, size = 0x8, scoped, tag = 'scoped memory for smooth_conv_block.1']
    %12 = vsyncpa [#allocation3], 0
    loop: start=0, step=1, limit=5
    $region2: #{smooth_conv_block.1} parent=1 // loop_pre_header
      _
    $region3: #{smooth_conv_block.1} parent=1 // loop_header
      %s14 = sphi 0, %s18
      %p15 = scmp.ge.s32.totalorder %s14, 5
      %s22 = sphi 0, %s22
      %s24 = sphi 0, %s22
      %s25 = sphi 0, %s24
      %s39 = sphi 0, %s25
      %s43 = sphi 0, %s43
      %s45 = sphi 0, %s43
      %s46 = sphi 0, %s45
      %s60 = sphi 0, %s46
      %s64 = sphi 0, %s64
      %s66 = sphi 0, %s64
      %s67 = sphi 0, %s66
      %s81 = sphi 0, %s67
      %s85 = sphi 0, %s85
      %s87 = sphi 0, %s85
      %s88 = sphi 0, %s87
      %s102 = sphi 0, %s88
      %s108 = sphi 0, %s110
      %s111 = sphi 0, %s108
      %s112 = sphi 0, %s111
      %s128 = sphi 0, %s112
      %s134 = sphi 0, %s136
      %s137 = sphi 0, %s134
      %s138 = sphi 0, %s137
      %s154 = sphi 0, %s138
      %s160 = sphi 0, %s162
      %s163 = sphi 0, %s160
      %s164 = sphi 0, %s163
      %s180 = sphi 0, %s164
      %s184 = sphi 0, %s184
      %s186 = sphi 0, %s184
      %s187 = sphi 0, %s186
      %s201 = sphi 0, %s187
    $region4: #{smooth_conv_block.1} parent=1 // loop_header_branch
      %17 = sbr.rel (%p15) target = $region8
    $region5: #{smooth_conv_block.1} parent=1 // loop_body
      %s19 = ssub.s32 %s14, 1
      %s20 = ssub.s32 %s14, 2
      %s21 = sadd.s32 %s14, 1
      %s23 = sadd.s32 %s22, 1
      %p26 = scmp.eq.s32.totalorder %s14, 2
      %p27 = scmp.ne.s32.totalorder %s22, %s24
      %p28 = scmp.eq.s32.totalorder %s14, 0
      %p29 = por %p27, %p28
      %p30 = scmp.ne.s32.totalorder %s22, %s24
      %p31 = scmp.eq.s32.totalorder %s19, 2
      %p32 = por %p30, %p31
      %p33 = scmp.ne.s32.totalorder %s24, %s25
      %p34 = scmp.eq.s32.totalorder %s19, 0
      %p35 = por %p33, %p34
      %p36 = scmp.ne.s32.totalorder %s24, %s25
      %p37 = scmp.eq.s32.totalorder %s20, 2
      %p38 = por %p36, %p37
      %p40 = scmp.ne.s32.totalorder %s25, %s39
      %p41 = scmp.eq.s32.totalorder %s20, 0
      %p42 = por %p40, %p41
      %s44 = sadd.s32 %s43, 1
      %p47 = scmp.eq.s32.totalorder %s14, 2
      %p48 = scmp.ne.s32.totalorder %s43, %s45
      %p49 = scmp.eq.s32.totalorder %s14, 0
      %p50 = por %p48, %p49
      %p51 = scmp.ne.s32.totalorder %s43, %s45
      %p52 = scmp.eq.s32.totalorder %s19, 2
      %p53 = por %p51, %p52
      %p54 = scmp.ne.s32.totalorder %s45, %s46
      %p55 = scmp.eq.s32.totalorder %s19, 0
      %p56 = por %p54, %p55
      %p57 = scmp.ne.s32.totalorder %s45, %s46
      %p58 = scmp.eq.s32.totalorder %s20, 2
      %p59 = por %p57, %p58
      %p61 = scmp.ne.s32.totalorder %s46, %s60
      %p62 = scmp.eq.s32.totalorder %s20, 0
      %p63 = por %p61, %p62
      %s65 = sadd.s32 %s64, 1
      %p68 = scmp.eq.s32.totalorder %s14, 2
      %p69 = scmp.ne.s32.totalorder %s64, %s66
      %p70 = scmp.eq.s32.totalorder %s14, 0
      %p71 = por %p69, %p70
      %p72 = scmp.ne.s32.totalorder %s64, %s66
      %p73 = scmp.eq.s32.totalorder %s19, 2
      %p74 = por %p72, %p73
      %p75 = scmp.ne.s32.totalorder %s66, %s67
      %p76 = scmp.eq.s32.totalorder %s19, 0
      %p77 = por %p75, %p76
      %p78 = scmp.ne.s32.totalorder %s66, %s67
      %p79 = scmp.eq.s32.totalorder %s20, 2
      %p80 = por %p78, %p79
      %p82 = scmp.ne.s32.totalorder %s67, %s81
      %p83 = scmp.eq.s32.totalorder %s20, 0
      %p84 = por %p82, %p83
      %s86 = sadd.s32 %s85, 1
      %p89 = scmp.eq.s32.totalorder %s14, 2
      %p90 = scmp.ne.s32.totalorder %s85, %s87
      %p91 = scmp.eq.s32.totalorder %s14, 0
      %p92 = por %p90, %p91
      %p93 = scmp.ne.s32.totalorder %s85, %s87
      %p94 = scmp.eq.s32.totalorder %s19, 2
      %p95 = por %p93, %p94
      %p96 = scmp.ne.s32.totalorder %s87, %s88
      %p97 = scmp.eq.s32.totalorder %s19, 0
      %p98 = por %p96, %p97
      %p99 = scmp.ne.s32.totalorder %s87, %s88
      %p100 = scmp.eq.s32.totalorder %s20, 2
      %p101 = por %p99, %p100
      %p103 = scmp.ne.s32.totalorder %s88, %s102
      %p104 = scmp.eq.s32.totalorder %s20, 0
      %p105 = por %p103, %p104
      %s106 = ssub.s32 %s14, %s21
      %p107 = scmp.eq.s32.totalorder %s106, 0
      %s109 = sadd.s32 %s108, 1
      %s110 = scalar_select %p107, %s108, %s109
      %p113 = pneg %p107
      %p114 = scmp.eq.s32.totalorder %s14, 2
      %p115 = por %p113, %p114
      %p116 = scmp.ne.s32.totalorder %s108, %s111
      %p117 = scmp.eq.s32.totalorder %s14, 0
      %p118 = por %p116, %p117
      %p119 = scmp.ne.s32.totalorder %s108, %s111
      %p120 = scmp.eq.s32.totalorder %s19, 2
      %p121 = por %p119, %p120
      %p122 = scmp.ne.s32.totalorder %s111, %s112
      %p123 = scmp.eq.s32.totalorder %s19, 0
      %p124 = por %p122, %p123
      %p125 = scmp.ne.s32.totalorder %s111, %s112
      %p126 = scmp.eq.s32.totalorder %s20, 2
      %p127 = por %p125, %p126
      %p129 = scmp.ne.s32.totalorder %s112, %s128
      %p130 = scmp.eq.s32.totalorder %s20, 0
      %p131 = por %p129, %p130
      %s132 = ssub.s32 %s14, %s21
      %p133 = scmp.eq.s32.totalorder %s132, 0
      %s135 = sadd.s32 %s134, 1
      %s136 = scalar_select %p133, %s134, %s135
      %p139 = pneg %p133
      %p140 = scmp.eq.s32.totalorder %s14, 2
      %p141 = por %p139, %p140
      %p142 = scmp.ne.s32.totalorder %s134, %s137
      %p143 = scmp.eq.s32.totalorder %s14, 0
      %p144 = por %p142, %p143
      %p145 = scmp.ne.s32.totalorder %s134, %s137
      %p146 = scmp.eq.s32.totalorder %s19, 2
      %p147 = por %p145, %p146
      %p148 = scmp.ne.s32.totalorder %s137, %s138
      %p149 = scmp.eq.s32.totalorder %s19, 0
      %p150 = por %p148, %p149
      %p151 = scmp.ne.s32.totalorder %s137, %s138
      %p152 = scmp.eq.s32.totalorder %s20, 2
      %p153 = por %p151, %p152
      %p155 = scmp.ne.s32.totalorder %s138, %s154
      %p156 = scmp.eq.s32.totalorder %s20, 0
      %p157 = por %p155, %p156
      %s158 = ssub.s32 %s14, %s21
      %p159 = scmp.eq.s32.totalorder %s158, 0
      %s161 = sadd.s32 %s160, 1
      %s162 = scalar_select %p159, %s160, %s161
      %p165 = pneg %p159
      %p166 = scmp.eq.s32.totalorder %s14, 2
      %p167 = por %p165, %p166
      %p168 = scmp.ne.s32.totalorder %s160, %s163
      %p169 = scmp.eq.s32.totalorder %s14, 0
      %p170 = por %p168, %p169
      %p171 = scmp.ne.s32.totalorder %s160, %s163
      %p172 = scmp.eq.s32.totalorder %s19, 2
      %p173 = por %p171, %p172
      %p174 = scmp.ne.s32.totalorder %s163, %s164
      %p175 = scmp.eq.s32.totalorder %s19, 0
      %p176 = por %p174, %p175
      %p177 = scmp.ne.s32.totalorder %s163, %s164
      %p178 = scmp.eq.s32.totalorder %s20, 2
      %p179 = por %p177, %p178
      %p181 = scmp.ne.s32.totalorder %s164, %s180
      %p182 = scmp.eq.s32.totalorder %s20, 0
      %p183 = por %p181, %p182
      %s185 = sadd.s32 %s184, 1
      %p188 = scmp.eq.s32.totalorder %s14, 2
      %p189 = scmp.ne.s32.totalorder %s184, %s186
      %p190 = scmp.eq.s32.totalorder %s14, 0
      %p191 = por %p189, %p190
      %p192 = scmp.ne.s32.totalorder %s184, %s186
      %p193 = scmp.eq.s32.totalorder %s19, 2
      %p194 = por %p192, %p193
      %p195 = scmp.ne.s32.totalorder %s186, %s187
      %p196 = scmp.eq.s32.totalorder %s19, 0
      %p197 = por %p195, %p196
      %p198 = scmp.ne.s32.totalorder %s186, %s187
      %p199 = scmp.eq.s32.totalorder %s20, 2
      %p200 = por %p198, %p199
      %p202 = scmp.ne.s32.totalorder %s187, %s201
      %p203 = scmp.eq.s32.totalorder %s20, 0
      %p204 = por %p202, %p203
      %p205 = scmp.le.s32.totalorder 1, %s14
      %p206 = scmp.lt.s32.totalorder %s14, 4
      %p207 = pnand %p205, %p206
      %p208 = pneg %p207
      // Predicated region
      $region9: #{smooth_conv_block.1} parent=5 // pred_check
        _
      $region10: #{smooth_conv_block.1} parent=5 // pred_check_branch
        %210 = sbr.rel (%p207) target = $region12
      $region11: #{smooth_conv_block.1} parent=5 // pred_region
        %s211 = ssub.s32 %s14, 1
        // Predicated region
        $region13: #{smooth_conv_block.1} parent=11 // pred_check
          %p212 = pneg %p35
        $region14: #{smooth_conv_block.1} parent=11 // pred_check_branch
          %214 = sbr.rel (%p212) target = $region16
        $region15: #{smooth_conv_block.1} parent=11 // pred_region
          _
        $region16: #{smooth_conv_block.1} parent=11 // pred_fallthru
          _
        // Predicated region
        $region17: #{smooth_conv_block.1} parent=11 // pred_check
          %p215 = pneg %p56
        $region18: #{smooth_conv_block.1} parent=11 // pred_check_branch
          %217 = sbr.rel (%p215) target = $region20
        $region19: #{smooth_conv_block.1} parent=11 // pred_region
          _
        $region20: #{smooth_conv_block.1} parent=11 // pred_fallthru
          _
        // Predicated region
        $region21: #{smooth_conv_block.1} parent=11 // pred_check
          %p218 = pneg %p77
        $region22: #{smooth_conv_block.1} parent=11 // pred_check_branch
          %220 = sbr.rel (%p218) target = $region24
        $region23: #{smooth_conv_block.1} parent=11 // pred_region
          _
        $region24: #{smooth_conv_block.1} parent=11 // pred_fallthru
          _
        // Predicated region
        $region25: #{smooth_conv_block.1} parent=11 // pred_check
          %p221 = pneg %p98
        $region26: #{smooth_conv_block.1} parent=11 // pred_check_branch
          %223 = sbr.rel (%p221) target = $region28
        $region27: #{smooth_conv_block.1} parent=11 // pred_region
          _
        $region28: #{smooth_conv_block.1} parent=11 // pred_fallthru
          _
      $region12: #{smooth_conv_block.1} parent=5 // pred_fallthru
        _
      %p224 = scmp.lt.s32.totalorder %s14, 3
      // Predicated region
      $region29: #{smooth_conv_block.1} parent=5 // pred_check
        %p225 = pneg %p224
      $region30: #{smooth_conv_block.1} parent=5 // pred_check_branch
        %227 = sbr.rel (%p225) target = $region32
      $region31: #{smooth_conv_block.1} parent=5 // pred_region
        // Predicated region
        $region33: #{smooth_conv_block.1} parent=31 // pred_check
          %p228 = pneg %p118
        $region34: #{smooth_conv_block.1} parent=31 // pred_check_branch
          %230 = sbr.rel (%p228) target = $region36
        $region35: #{smooth_conv_block.1} parent=31 // pred_region
          %p231 = scmp.lt.s32.totalorder %s14, 2
          %s232 = scalar_select %p231, %s14, 2
          %s233 = smul.addr %s232, 26
          %s234 = smul.addr %s233, 4
          %s235 = scalar_lea.vmem %s4, %s234
        $region36: #{smooth_conv_block.1} parent=31 // pred_fallthru
          _
        // Predicated region
        $region37: #{smooth_conv_block.1} parent=31 // pred_check
          %p236 = pneg %p144
        $region38: #{smooth_conv_block.1} parent=31 // pred_check_branch
          %238 = sbr.rel (%p236) target = $region40
        $region39: #{smooth_conv_block.1} parent=31 // pred_region
          %p239 = scmp.lt.s32.totalorder %s14, 2
          %s240 = scalar_select %p239, %s14, 2
          %s241 = smul.addr %s240, 4
          %s242 = smul.addr %s241, 4
          %s243 = scalar_lea.vmem %s5, %s242
        $region40: #{smooth_conv_block.1} parent=31 // pred_fallthru
          _
        // Predicated region
        $region41: #{smooth_conv_block.1} parent=31 // pred_check
          %p244 = pneg %p170
        $region42: #{smooth_conv_block.1} parent=31 // pred_check_branch
          %246 = sbr.rel (%p244) target = $region44
        $region43: #{smooth_conv_block.1} parent=31 // pred_region
          %p247 = scmp.lt.s32.totalorder %s14, 2
          %s248 = scalar_select %p247, %s14, 2
          %s249 = smul.addr %s248, 8
          %s250 = scalar_lea.vmem %s6, %s249
        $region44: #{smooth_conv_block.1} parent=31 // pred_fallthru
          _
      $region32: #{smooth_conv_block.1} parent=5 // pred_fallthru
        _
      %p251 = scmp.le.s32.totalorder 1, %s14
      %p252 = scmp.lt.s32.totalorder %s14, 4
      %p253 = pnand %p251, %p252
      %p254 = pneg %p253
      // Predicated region
      $region45: #{smooth_conv_block.1} parent=5 // pred_check
        _
      $region46: #{smooth_conv_block.1} parent=5 // pred_check_branch
        %256 = sbr.rel (%p253) target = $region48
      $region47: #{smooth_conv_block.1} parent=5 // pred_region
        %s257 = ssub.s32 %s14, 1
        %p258 = pneg %p35
        %p259 = pneg %p32
        %p260 = pneg %p56
        %p261 = pneg %p53
        %p262 = pneg %p77
        %p263 = pneg %p74
        %p264 = pneg %p98
        %p265 = pneg %p95
        %p266 = scmp.lt.s32.totalorder %s19, 2
        %s267 = scalar_select %p266, %s19, 2
        %s268 = smul.addr %s267, 26
        %s269 = smul.addr %s268, 4
        %s270 = scalar_lea.vmem %s4, %s269
        %p271 = pneg %p124
        %p272 = pneg %p121
        %p273 = scmp.lt.s32.totalorder %s19, 2
        %s274 = scalar_select %p273, %s19, 2
        %s275 = smul.addr %s274, 4
        %s276 = smul.addr %s275, 4
        %s277 = scalar_lea.vmem %s5, %s276
        %p278 = pneg %p150
        %p279 = pneg %p147
        %p280 = scmp.lt.s32.totalorder %s19, 2
        %s281 = scalar_select %p280, %s19, 2
        %s282 = smul.addr %s281, 8
        %s283 = scalar_lea.vmem %s6, %s282
        %p284 = pneg %p176
        %p285 = pneg %p173
        %p286 = pneg %p197
        %p287 = pneg %p194
        %p288 = scmp.lt.s32.totalorder %s19, 2
        %s289 = scalar_select %p288, %s19, 2
        %s290 = smul.addr %s289, 26
        %s291 = smul.addr %s290, 4
        %s292 = scalar_lea.vmem %s4, %s291
        %p293 = scmp.lt.s32.totalorder %s19, 2
        %s294 = scalar_select %p293, %s19, 2
        %s295 = smul.addr %s294, 4
        %s296 = smul.addr %s295, 4
        %s297 = scalar_lea.vmem %s5, %s296
        %p298 = scmp.lt.s32.totalorder %s19, 2
        %s299 = scalar_select %p298, %s19, 2
        %s300 = smul.addr %s299, 8
        %s301 = scalar_lea.vmem %s6, %s300
        %p303 = scmp.eq.s32.totalorder %s19, 0
        // Predicated region
        $region49: #{smooth_conv_block.1} parent=47 // pred_check
          %p304 = pneg %p303
        $region50: #{smooth_conv_block.1} parent=47 // pred_check_branch
          %306 = sbr.rel (%p304) target = $region52
        $region51: #{smooth_conv_block.1} parent=47 // pred_region
          %v307 = vld [vmem:[%s0] sm:$0xff]
          %v308 = vld [vmem:[%s0 + $0x8] sm:$0xff]
          %vm309 = vcmask 261120
          %310 = vst.msk [vmem:[#allocation2] sm:$0xff] %vm309, %v307
          %311 = vst.msk [vmem:[#allocation2 + $0x8] sm:$0xff] %vm309, %v308
        $region52: #{smooth_conv_block.1} parent=47 // pred_fallthru
          _
        %v312 = vld [vmem:[#allocation2] sm:$0xff]
        %v313 = vld [vmem:[#allocation2 + $0x8] sm:$0xff]
        %v314 = vld [vmem:[%s301] sm:$0xff]
        %vm315 = vcmask 261120
        %v316 = vsel %vm315, %v312, 0.0
        %v317 = vsel %vm315, %v313, 0.0
        %v318 = vadd.f32 %v316, %v317
        %v319 = vrot.slane %v318, 4
        %v320 = vadd.f32 %v318, %v319
        %v321 = vrot.slane %v320, 2
        %v322 = vadd.f32 %v320, %v321
        %v323 = vrot.slane %v322, 1
        %v324 = vadd.f32 %v322, %v323
        %v325 = vmul.f32 %v324, 0.0625
        %v326 = vsub.f32 %v312, %v325
        %v327 = vsub.f32 %v313, %v325
        %v328 = vmul.f32 %v326, %v326
        %v329 = vmul.f32 %v327, %v327
        %v330 = vsel %vm315, %v328, 0.0
        %v331 = vsel %vm315, %v329, 0.0
        %v332 = vadd.f32 %v330, %v331
        %v333 = vrot.slane %v332, 4
        %v334 = vadd.f32 %v332, %v333
        %v335 = vrot.slane %v334, 2
        %v336 = vadd.f32 %v334, %v335
        %v337 = vrot.slane %v336, 1
        %v338 = vadd.f32 %v336, %v337
        %v339 = vmul.f32 %v338, 0.0625
        %v340 = vadd.f32 %v339, 1e-05
        %v341 = vrsqrt.pop %v340
        %v342 = vmul.f32 %v326, %v341
        %v343 = vmul.f32 %v327, %v341
        %v344 = vlaneseq
        %v345 = vshrl.u32 %v344, 7
        %v346 = vsub.s32 0, %v345
        %v347 = vrot.slane %v314, %v346
        %v348 = vmul.f32 %v342, %v347
        %v349 = vmul.f32 %v343, %v347
        %v350 = vlaneseq
        %v351 = vshrl.u32 %v350, 7
        %v352 = vsub.s32 1, %v351
        %v353 = vrot.slane %v314, %v352
        %v354 = vadd.f32 %v348, %v353
        %v355 = vadd.f32 %v349, %v353
        %v356 = vpack.c.bf16 %v355, %v354
        %v357 = vld [vmem:[%s297] sm:$0xf]
        %v358 = vld [vmem:[%s297 + $0x4] sm:$0xf]
        %v359 = vld [vmem:[%s297 + $0x8] sm:$0xf]
        %v360 = vld [vmem:[%s297 + $0xc] sm:$0xf]
        %v365 = vunpack.c.l.b16 %v357
        %v366 = vunpack.c.l.b16 %v358
        %v367 = vunpack.c.l.b16 %v359
        %v368 = vunpack.c.l.b16 %v360
        %v369 = vpack.c.b16 %v366, %v365
        %v370 = vpack.c.b16 %v368, %v367
        %v374 = vsel %vm315, %v356, 0
        %376 = vmatprep.subr.bf16.mxu0 0
        %377 = vmatpush1.bf16.msra.mxu0 %v369
        %378 = vmatprep.subr.bf16.mxu0 0
        %379 = vmatpush1.bf16.msra.mxu0 %v370
        %380 = vmatprep.subr.bf16.mxu0 0
        %381 = vmatpush1.bf16.msra.mxu0 0
        %382 = vmatprep.subr.bf16.mxu0 0
        %383 = vmatpush1.bf16.msra.mxu0 0
        %384 = vmatprep.subr.bf16.mxu0 0
        %385 = vmatpush1.bf16.msra.mxu0 0
        %386 = vmatprep.subr.bf16.mxu0 0
        %387 = vmatpush1.bf16.msra.mxu0 0
        %388 = vmatprep.subr.bf16.mxu0 0
        %389 = vmatpush1.bf16.msra.mxu0 0
        %390 = vmatprep.subr.bf16.mxu0 0
        %391 = vmatpush1.bf16.msra.mxu0 0
        %392 = vmatprep.subr.bf16.mxu0 0
        %393 = vmatpush1.bf16.msra.mxu0 0
        %394 = vmatprep.subr.bf16.mxu0 0
        %395 = vmatpush1.bf16.msra.mxu0 0
        %396 = vmatprep.subr.bf16.mxu0 0
        %397 = vmatpush1.bf16.msra.mxu0 0
        %398 = vmatprep.subr.bf16.mxu0 0
        %399 = vmatpush1.bf16.msra.mxu0 0
        %400 = vmatprep.subr.bf16.mxu0 0
        %401 = vmatpush1.bf16.msra.mxu0 0
        %402 = vmatprep.subr.bf16.mxu0 0
        %403 = vmatpush1.bf16.msra.mxu0 0
        %404 = vmatprep.subr.bf16.mxu0 0
        %405 = vmatpush1.bf16.msra.mxu0 0
        %406 = vmatprep.subr.bf16.mxu0 0
        %407 = vmatpush1.bf16.msra.mxu0 0
        %408 = vmatprep.mubr.bf16.mxu0 0
        %409 = vmatmul.mubr.bf16.gmra.mrb[0].mxu0 %v374
        %v410 = vpop.f32.mrb[0].mxu0
        %v411 = vadd.f32 0.0, %v410
        %v412 = vpop.f32.mrb[0].mxu0
        %v413 = vpop.f32.mrb[0].mxu0
        %v414 = vadd.f32 0.0, %v413
        %v415 = vpop.f32.mrb[0].mxu0
        %416 = vdwg.mxu0
        %v417 = vpack.c.bf16 %v414, %v411
        %419 = vrot.lane.b32.xlu0 %v417, 32
        %v420 = vpop.permute.xlu0 %419
        %v422 = vsel %vm315, %v356, %v420
        %v424 = vld [vmem:[%s2] sm:$0xf]
        %v425 = vld [vmem:[%s2 + $0x4] sm:$0xf]
        %v426 = vld [vmem:[%s2 + $0x8] sm:$0xf]
        %v427 = vld [vmem:[%s2 + $0xc] sm:$0xf]
        %v428 = vld [vmem:[%s2 + $0x10] sm:$0xf]
        %v429 = vld [vmem:[%s2 + $0x14] sm:$0xf]
        %v430 = vld [vmem:[%s2 + $0x18] sm:$0xf]
        %v431 = vld [vmem:[%s2 + $0x1c] sm:$0xf]
        %v432 = vld [vmem:[%s2 + $0x20] sm:$0xf]
        %v433 = vld [vmem:[%s2 + $0x24] sm:$0xf]
        %v434 = vld [vmem:[%s2 + $0x28] sm:$0xf]
        %v435 = vld [vmem:[%s2 + $0x2c] sm:$0xf]
        %v448 = vunpack.c.l.b16 %v424
        %v449 = vunpack.c.l.b16 %v425
        %v450 = vunpack.c.l.b16 %v426
        %v451 = vunpack.c.l.b16 %v427
        %v452 = vunpack.c.l.b16 %v428
        %v453 = vunpack.c.l.b16 %v429
        %v454 = vunpack.c.l.b16 %v430
        %v455 = vunpack.c.l.b16 %v431
        %v456 = vunpack.c.l.b16 %v432
        %v457 = vunpack.c.l.b16 %v433
        %v458 = vunpack.c.l.b16 %v434
        %v459 = vunpack.c.l.b16 %v435
        %v460 = vpack.c.b16 %v449, %v448
        %v461 = vpack.c.b16 %v451, %v450
        %v462 = vpack.c.b16 %v453, %v452
        %v463 = vpack.c.b16 %v455, %v454
        %v464 = vpack.c.b16 %v457, %v456
        %v465 = vpack.c.b16 %v459, %v458
        %vm466 = vcmask 130048
        %v468 = vsel %vm466, %v460, 0
        %v471 = vsel %vm466, %v461, 0
        %v474 = vsel %vm466, %v462, 0
        %v477 = vsel %vm466, %v463, 0
        %v480 = vsel %vm466, %v464, 0
        %v483 = vsel %vm466, %v465, 0
        %485 = vmatprep.subr.bf16.mxu0 0
        %486 = vmatpush1.bf16.msra.mxu0 %v422
        %487 = vmatprep.subr.bf16.mxu0 0
        %488 = vmatpush1.bf16.msra.mxu0 0
        %489 = vmatprep.subr.bf16.mxu0 0
        %490 = vmatpush1.bf16.msra.mxu0 0
        %491 = vmatprep.subr.bf16.mxu0 0
        %492 = vmatpush1.bf16.msra.mxu0 0
        %493 = vmatprep.subr.bf16.mxu0 0
        %494 = vmatpush1.bf16.msra.mxu0 0
        %495 = vmatprep.subr.bf16.mxu0 0
        %496 = vmatpush1.bf16.msra.mxu0 0
        %497 = vmatprep.subr.bf16.mxu0 0
        %498 = vmatpush1.bf16.msra.mxu0 0
        %499 = vmatprep.subr.bf16.mxu0 0
        %500 = vmatpush1.bf16.msra.mxu0 0
        %501 = vmatprep.subr.bf16.mxu0 0
        %502 = vmatpush1.bf16.msra.mxu0 0
        %503 = vmatprep.subr.bf16.mxu0 0
        %504 = vmatpush1.bf16.msra.mxu0 0
        %505 = vmatprep.subr.bf16.mxu0 0
        %506 = vmatpush1.bf16.msra.mxu0 0
        %507 = vmatprep.subr.bf16.mxu0 0
        %508 = vmatpush1.bf16.msra.mxu0 0
        %509 = vmatprep.subr.bf16.mxu0 0
        %510 = vmatpush1.bf16.msra.mxu0 0
        %511 = vmatprep.subr.bf16.mxu0 0
        %512 = vmatpush1.bf16.msra.mxu0 0
        %513 = vmatprep.subr.bf16.mxu0 0
        %514 = vmatpush1.bf16.msra.mxu0 0
        %515 = vmatprep.subr.bf16.mxu0 0
        %516 = vmatpush1.bf16.msra.mxu0 0
        %517 = vmatprep.mubr.bf16.mxu0 0
        %518 = vmatmul.mubr.bf16.gmra.mrb[0].mxu0 %v468
        %v519 = vpop.f32.mrb[0].mxu0
        %v520 = vadd.f32 0.0, %v519
        %v521 = vpop.f32.mrb[0].mxu0
        %v522 = vpop.f32.mrb[0].mxu0
        %v523 = vadd.f32 0.0, %v522
        %v524 = vpop.f32.mrb[0].mxu0
        %525 = vmatprep.mubr.bf16.mxu0 0
        %526 = vmatmul.mubr.bf16.gmra.mrb[0].mxu0 %v471
        %v527 = vpop.f32.mrb[0].mxu0
        %v528 = vadd.f32 0.0, %v527
        %v529 = vpop.f32.mrb[0].mxu0
        %v530 = vpop.f32.mrb[0].mxu0
        %v531 = vadd.f32 0.0, %v530
        %v532 = vpop.f32.mrb[0].mxu0
        %533 = vmatprep.mubr.bf16.mxu0 0
        %534 = vmatmul.mubr.bf16.gmra.mrb[0].mxu0 %v474
        %v535 = vpop.f32.mrb[0].mxu0
        %v536 = vadd.f32 0.0, %v535
        %v537 = vpop.f32.mrb[0].mxu0
        %v538 = vpop.f32.mrb[0].mxu0
        %v539 = vadd.f32 0.0, %v538
        %v540 = vpop.f32.mrb[0].mxu0
        %541 = vmatprep.mubr.bf16.mxu0 0
        %542 = vmatmul.mubr.bf16.gmra.mrb[0].mxu0 %v477
        %v543 = vpop.f32.mrb[0].mxu0
        %v544 = vadd.f32 0.0, %v543
        %v545 = vpop.f32.mrb[0].mxu0
        %v546 = vpop.f32.mrb[0].mxu0
        %v547 = vadd.f32 0.0, %v546
        %v548 = vpop.f32.mrb[0].mxu0
        %549 = vmatprep.mubr.bf16.mxu0 0
        %550 = vmatmul.mubr.bf16.gmra.mrb[0].mxu0 %v480
        %v551 = vpop.f32.mrb[0].mxu0
        %v552 = vadd.f32 0.0, %v551
        %v553 = vpop.f32.mrb[0].mxu0
        %v554 = vpop.f32.mrb[0].mxu0
        %v555 = vadd.f32 0.0, %v554
        %v556 = vpop.f32.mrb[0].mxu0
        %557 = vmatprep.mubr.bf16.mxu0 0
        %558 = vmatmul.mubr.bf16.gmra.mrb[0].mxu0 %v483
        %v559 = vpop.f32.mrb[0].mxu0
        %v560 = vadd.f32 0.0, %v559
        %v561 = vpop.f32.mrb[0].mxu0
        %v562 = vpop.f32.mrb[0].mxu0
        %v563 = vadd.f32 0.0, %v562
        %v564 = vpop.f32.mrb[0].mxu0
        %565 = vdwg.mxu0
        %v566 = vld [vmem:[%s292] sm:$0xf]
        %v567 = vld [vmem:[%s292 + $0x4] sm:$0xf]
        %v568 = vld [vmem:[%s292 + $0x8] sm:$0xf]
        %v569 = vld [vmem:[%s292 + $0xc] sm:$0xf]
        %v570 = vld [vmem:[%s292 + $0x10] sm:$0xf]
        %v571 = vld [vmem:[%s292 + $0x14] sm:$0xf]
        %v572 = vld [vmem:[%s1] sm:$0xf]
        %v573 = vld [vmem:[%s1 + $0x4] sm:$0xf]
        %v574 = vld [vmem:[%s1 + $0x8] sm:$0xf]
        %v575 = vld [vmem:[%s1 + $0xc] sm:$0xf]
        %v576 = vld [vmem:[%s1 + $0x10] sm:$0xf]
        %v577 = vld [vmem:[%s1 + $0x14] sm:$0xf]
        %v578 = vlaneseq
        %v579 = vshrl.u32 %v578, 7
        %v580 = vsub.s32 2, %v579
        %v581 = vrot.slane %v314, %v580
        %v588 = vunpack.c.l.b16 %v572
        %v589 = vunpack.c.l.b16 %v573
        %v590 = vunpack.c.l.b16 %v574
        %v591 = vunpack.c.l.b16 %v575
        %v592 = vunpack.c.l.b16 %v576
        %v593 = vunpack.c.l.b16 %v577
        %v594 = vpack.c.b16 %v589, %v588
        %v595 = vpack.c.b16 %v591, %v590
        %v596 = vpack.c.b16 %v593, %v592
        %v599 = vunpack.c.l.b16 %v566
        %v600 = vunpack.c.l.b16 %v567
        %v601 = vpack.c.b16 %v600, %v599
        %v604 = vsel %vm466, %v594, 0
        %v607 = vsel %vm466, %v595, 0
        %v610 = vsel %vm466, %v596, 0
        %612 = vmatprep.subr.bf16.mxu0 0
        %613 = vmatpush1.bf16.msra.mxu0 %v601
        %614 = vmatprep.subr.bf16.mxu0 0
        %615 = vmatpush1.bf16.msra.mxu0 0
        %616 = vmatprep.subr.bf16.mxu0 0
        %617 = vmatpush1.bf16.msra.mxu0 0
        %618 = vmatprep.subr.bf16.mxu0 0
        %619 = vmatpush1.bf16.msra.mxu0 0
        %620 = vmatprep.subr.bf16.mxu0 0
        %621 = vmatpush1.bf16.msra.mxu0 0
        %622 = vmatprep.subr.bf16.mxu0 0
        %623 = vmatpush1.bf16.msra.mxu0 0
        %624 = vmatprep.subr.bf16.mxu0 0
        %625 = vmatpush1.bf16.msra.mxu0 0
        %626 = vmatprep.subr.bf16.mxu0 0
        %627 = vmatpush1.bf16.msra.mxu0 0
        %628 = vmatprep.subr.bf16.mxu0 0
        %629 = vmatpush1.bf16.msra.mxu0 0
        %630 = vmatprep.subr.bf16.mxu0 0
        %631 = vmatpush1.bf16.msra.mxu0 0
        %632 = vmatprep.subr.bf16.mxu0 0
        %633 = vmatpush1.bf16.msra.mxu0 0
        %634 = vmatprep.subr.bf16.mxu0 0
        %635 = vmatpush1.bf16.msra.mxu0 0
        %636 = vmatprep.subr.bf16.mxu0 0
        %637 = vmatpush1.bf16.msra.mxu0 0
        %638 = vmatprep.subr.bf16.mxu0 0
        %639 = vmatpush1.bf16.msra.mxu0 0
        %640 = vmatprep.subr.bf16.mxu0 0
        %641 = vmatpush1.bf16.msra.mxu0 0
        %642 = vmatprep.subr.bf16.mxu0 0
        %643 = vmatpush1.bf16.msra.mxu0 0
        %644 = vmatprep.mubr.bf16.mxu0 0
        %645 = vmatmul.mubr.bf16.gmra.mrb[0].mxu0 %v604
        %v646 = vpop.f32.mrb[0].mxu0
        %v647 = vadd.f32 %v581, %v646
        %v648 = vpop.f32.mrb[0].mxu0
        %v649 = vpop.f32.mrb[0].mxu0
        %v650 = vadd.f32 %v581, %v649
        %v651 = vpop.f32.mrb[0].mxu0
        %652 = vmatprep.mubr.bf16.mxu0 0
        %653 = vmatmul.mubr.bf16.gmra.mrb[0].mxu0 %v607
        %v654 = vpop.f32.mrb[0].mxu0
        %v655 = vadd.f32 %v581, %v654
        %v656 = vpop.f32.mrb[0].mxu0
        %v657 = vpop.f32.mrb[0].mxu0
        %v658 = vadd.f32 %v581, %v657
        %v659 = vpop.f32.mrb[0].mxu0
        %660 = vmatprep.mubr.bf16.mxu0 0
        %661 = vmatmul.mubr.bf16.gmra.mrb[0].mxu0 %v610
        %v662 = vpop.f32.mrb[0].mxu0
        %v663 = vadd.f32 %v581, %v662
        %v664 = vpop.f32.mrb[0].mxu0
        %v665 = vpop.f32.mrb[0].mxu0
        %v666 = vadd.f32 %v581, %v665
        %v667 = vpop.f32.mrb[0].mxu0
        %668 = vdwg.mxu0
        %v669 = vmax.f32 %v647, 0.0
        %v670 = vmax.f32 %v650, 0.0
        %v671 = vmax.f32 %v655, 0.0
        %v672 = vmax.f32 %v658, 0.0
        %v673 = vmax.f32 %v663, 0.0
        %v674 = vmax.f32 %v666, 0.0
        %v675 = vpack.c.bf16 %v670, %v669
        %v676 = vpack.c.bf16 %v672, %v671
        %v677 = vpack.c.bf16 %v674, %v673
        %v678 = vld [vmem:[%s292 + $0x18] sm:$0xf]
        %v679 = vld [vmem:[%s292 + $0x1c] sm:$0xf]
        %v680 = vld [vmem:[%s292 + $0x20] sm:$0xf]
        %v681 = vld [vmem:[%s292 + $0x24] sm:$0xf]
        %v682 = vld [vmem:[%s292 + $0x28] sm:$0xf]
        %v683 = vld [vmem:[%s292 + $0x2c] sm:$0xf]
        %v684 = vld [vmem:[%s292 + $0x30] sm:$0xf]
        %v685 = vld [vmem:[%s292 + $0x34] sm:$0xf]
        %v690 = vunpack.c.l.b16 %v568
        %v691 = vunpack.c.l.b16 %v569
        %v692 = vunpack.c.l.b16 %v570
        %v693 = vunpack.c.l.b16 %v571
        %v694 = vpack.c.b16 %v691, %v690
        %v695 = vpack.c.b16 %v693, %v692
        %704 = vrot.lane.b32.xlu0 %v520, 96
        %v705 = vpop.permute.xlu0 %704
        %706 = vrot.lane.b32.xlu0 %v523, 96
        %v707 = vpop.permute.xlu0 %706
        %708 = vrot.lane.b32.xlu0 %v528, 96
        %v709 = vpop.permute.xlu0 %708
        %710 = vrot.lane.b32.xlu0 %v531, 96
        %v711 = vpop.permute.xlu0 %710
        %712 = vrot.lane.b32.xlu0 %v536, 96
        %v713 = vpop.permute.xlu0 %712
        %714 = vrot.lane.b32.xlu0 %v539, 96
        %v715 = vpop.permute.xlu0 %714
        %v723 = vsel %vm315, %v675, 0
        %v726 = vsel %vm315, %v676, 0
        %v729 = vsel %vm315, %v677, 0
        %731 = vmatprep.subr.bf16.mxu0 0
        %732 = vmatpush1.bf16.msra.mxu0 %v694
        %733 = vmatprep.subr.bf16.mxu0 0
        %734 = vmatpush1.bf16.msra.mxu0 %v695
        %735 = vmatprep.subr.bf16.mxu0 0
        %736 = vmatpush1.bf16.msra.mxu0 0
        %737 = vmatprep.subr.bf16.mxu0 0
        %738 = vmatpush1.bf16.msra.mxu0 0
        %739 = vmatprep.subr.bf16.mxu0 0
        %740 = vmatpush1.bf16.msra.mxu0 0
        %741 = vmatprep.subr.bf16.mxu0 0
        %742 = vmatpush1.bf16.msra.mxu0 0
        %743 = vmatprep.subr.bf16.mxu0 0
        %744 = vmatpush1.bf16.msra.mxu0 0
        %745 = vmatprep.subr.bf16.mxu0 0
        %746 = vmatpush1.bf16.msra.mxu0 0
        %747 = vmatprep.subr.bf16.mxu0 0
        %748 = vmatpush1.bf16.msra.mxu0 0
        %749 = vmatprep.subr.bf16.mxu0 0
        %750 = vmatpush1.bf16.msra.mxu0 0
        %751 = vmatprep.subr.bf16.mxu0 0
        %752 = vmatpush1.bf16.msra.mxu0 0
        %753 = vmatprep.subr.bf16.mxu0 0
        %754 = vmatpush1.bf16.msra.mxu0 0
        %755 = vmatprep.subr.bf16.mxu0 0
        %756 = vmatpush1.bf16.msra.mxu0 0
        %757 = vmatprep.subr.bf16.mxu0 0
        %758 = vmatpush1.bf16.msra.mxu0 0
        %759 = vmatprep.subr.bf16.mxu0 0
        %760 = vmatpush1.bf16.msra.mxu0 0
        %761 = vmatprep.subr.bf16.mxu0 0
        %762 = vmatpush1.bf16.msra.mxu0 0
        %763 = vmatprep.mubr.bf16.mxu0 0
        %764 = vmatmul.mubr.bf16.gmra.mrb[0].mxu0 %v723
        %v765 = vpop.f32.mrb[0].mxu0
        %v766 = vadd.f32 %v705, %v765
        %v767 = vpop.f32.mrb[0].mxu0
        %v768 = vpop.f32.mrb[0].mxu0
        %v769 = vadd.f32 %v707, %v768
        %v770 = vpop.f32.mrb[0].mxu0
        %771 = vmatprep.mubr.bf16.mxu0 0
        %772 = vmatmul.mubr.bf16.gmra.mrb[0].mxu0 %v726
        %v773 = vpop.f32.mrb[0].mxu0
        %v774 = vadd.f32 %v709, %v773
        %v775 = vpop.f32.mrb[0].mxu0
        %v776 = vpop.f32.mrb[0].mxu0
        %v777 = vadd.f32 %v711, %v776
        %v778 = vpop.f32.mrb[0].mxu0
        %779 = vmatprep.mubr.bf16.mxu0 0
        %780 = vmatmul.mubr.bf16.gmra.mrb[0].mxu0 %v729
        %v781 = vpop.f32.mrb[0].mxu0
        %v782 = vadd.f32 %v713, %v781
        %v783 = vpop.f32.mrb[0].mxu0
        %v784 = vpop.f32.mrb[0].mxu0
        %v785 = vadd.f32 %v715, %v784
        %v786 = vpop.f32.mrb[0].mxu0
        %787 = vdwg.mxu0
        %794 = vrot.lane.b32.xlu0 %v544, 64
        %v795 = vpop.permute.xlu0 %794
        %796 = vrot.lane.b32.xlu0 %v547, 64
        %v797 = vpop.permute.xlu0 %796
        %798 = vrot.lane.b32.xlu0 %v552, 64
        %v799 = vpop.permute.xlu0 %798
        %800 = vrot.lane.b32.xlu0 %v555, 64
        %v801 = vpop.permute.xlu0 %800
        %802 = vrot.lane.b32.xlu0 %v560, 64
        %v803 = vpop.permute.xlu0 %802
        %804 = vrot.lane.b32.xlu0 %v563, 64
        %v805 = vpop.permute.xlu0 %804
        %v812 = vadd.f32 %v766, %v795
        %v813 = vadd.f32 %v769, %v797
        %v814 = vadd.f32 %v774, %v799
        %v815 = vadd.f32 %v777, %v801
        %v816 = vadd.f32 %v782, %v803
        %v817 = vadd.f32 %v785, %v805
        %v818 = vlaneseq
        %v819 = vshrl.u32 %v818, 7
        %v820 = vsub.s32 3, %v819
        %v821 = vrot.slane %v314, %v820
        %v822 = vadd.f32 %v812, %v821
        %v823 = vadd.f32 %v813, %v821
        %v824 = vadd.f32 %v814, %v821
        %v825 = vadd.f32 %v815, %v821
        %v826 = vadd.f32 %v816, %v821
        %v827 = vadd.f32 %v817, %v821
        %v828 = vmax.f32 %v822, 0.0
        %v829 = vmax.f32 %v823, 0.0
        %v830 = vmax.f32 %v824, 0.0
        %v831 = vmax.f32 %v825, 0.0
        %v832 = vmax.f32 %v826, 0.0
        %v833 = vmax.f32 %v827, 0.0
        %v834 = vpack.c.bf16 %v829, %v828
        %v835 = vpack.c.bf16 %v831, %v830
        %v836 = vpack.c.bf16 %v833, %v832
        %v837 = vlaneseq
        %v838 = vshrl.u32 %v837, 7
        %v839 = vsub.s32 4, %v838
        %v840 = vrot.slane %v314, %v839
        %v845 = vunpack.c.l.b16 %v678
        %v846 = vunpack.c.l.b16 %v679
        %v847 = vunpack.c.l.b16 %v680
        %v848 = vunpack.c.l.b16 %v681
        %v849 = vpack.c.b16 %v846, %v845
        %v850 = vpack.c.b16 %v848, %v847
        %v854 = vsel %vm315, %v834, 0
        %v857 = vsel %vm315, %v835, 0
        %v860 = vsel %vm315, %v836, 0
        %862 = vmatprep.subr.bf16.mxu0 0
        %863 = vmatpush1.bf16.msra.mxu0 %v849
        %864 = vmatprep.subr.bf16.mxu0 0
        %865 = vmatpush1.bf16.msra.mxu0 %v850
        %866 = vmatprep.subr.bf16.mxu0 0
        %867 = vmatpush1.bf16.msra.mxu0 0
        %868 = vmatprep.subr.bf16.mxu0 0
        %869 = vmatpush1.bf16.msra.mxu0 0
        %870 = vmatprep.subr.bf16.mxu0 0
        %871 = vmatpush1.bf16.msra.mxu0 0
        %872 = vmatprep.subr.bf16.mxu0 0
        %873 = vmatpush1.bf16.msra.mxu0 0
        %874 = vmatprep.subr.bf16.mxu0 0
        %875 = vmatpush1.bf16.msra.mxu0 0
        %876 = vmatprep.subr.bf16.mxu0 0
        %877 = vmatpush1.bf16.msra.mxu0 0
        %878 = vmatprep.subr.bf16.mxu0 0
        %879 = vmatpush1.bf16.msra.mxu0 0
        %880 = vmatprep.subr.bf16.mxu0 0
        %881 = vmatpush1.bf16.msra.mxu0 0
        %882 = vmatprep.subr.bf16.mxu0 0
        %883 = vmatpush1.bf16.msra.mxu0 0
        %884 = vmatprep.subr.bf16.mxu0 0
        %885 = vmatpush1.bf16.msra.mxu0 0
        %886 = vmatprep.subr.bf16.mxu0 0
        %887 = vmatpush1.bf16.msra.mxu0 0
        %888 = vmatprep.subr.bf16.mxu0 0
        %889 = vmatpush1.bf16.msra.mxu0 0
        %890 = vmatprep.subr.bf16.mxu0 0
        %891 = vmatpush1.bf16.msra.mxu0 0
        %892 = vmatprep.subr.bf16.mxu0 0
        %893 = vmatpush1.bf16.msra.mxu0 0
        %894 = vmatprep.mubr.bf16.mxu0 0
        %895 = vmatmul.mubr.bf16.gmra.mrb[0].mxu0 %v854
        %v896 = vpop.f32.mrb[0].mxu0
        %v897 = vadd.f32 %v840, %v896
        %v898 = vpop.f32.mrb[0].mxu0
        %v899 = vpop.f32.mrb[0].mxu0
        %v900 = vadd.f32 %v840, %v899
        %v901 = vpop.f32.mrb[0].mxu0
        %902 = vmatprep.mubr.bf16.mxu0 0
        %903 = vmatmul.mubr.bf16.gmra.mrb[0].mxu0 %v857
        %v904 = vpop.f32.mrb[0].mxu0
        %v905 = vadd.f32 %v840, %v904
        %v906 = vpop.f32.mrb[0].mxu0
        %v907 = vpop.f32.mrb[0].mxu0
        %v908 = vadd.f32 %v840, %v907
        %v909 = vpop.f32.mrb[0].mxu0
        %910 = vmatprep.mubr.bf16.mxu0 0
        %911 = vmatmul.mubr.bf16.gmra.mrb[0].mxu0 %v860
        %v912 = vpop.f32.mrb[0].mxu0
        %v913 = vadd.f32 %v840, %v912
        %v914 = vpop.f32.mrb[0].mxu0
        %v915 = vpop.f32.mrb[0].mxu0
        %v916 = vadd.f32 %v840, %v915
        %v917 = vpop.f32.mrb[0].mxu0
        %918 = vdwg.mxu0
        %v919 = vmax.f32 %v897, 0.0
        %v920 = vmax.f32 %v900, 0.0
        %v921 = vmax.f32 %v905, 0.0
        %v922 = vmax.f32 %v908, 0.0
        %v923 = vmax.f32 %v913, 0.0
        %v924 = vmax.f32 %v916, 0.0
        %v925 = vpack.c.bf16 %v920, %v919
        %v926 = vpack.c.bf16 %v922, %v921
        %v927 = vpack.c.bf16 %v924, %v923
        %v928 = vlaneseq
        %v929 = vshrl.u32 %v928, 7
        %v930 = vsub.s32 5, %v929
        %v931 = vrot.slane %v314, %v930
        %v936 = vunpack.c.l.b16 %v682
        %v937 = vunpack.c.l.b16 %v683
        %v938 = vunpack.c.l.b16 %v684
        %v939 = vunpack.c.l.b16 %v685
        %v940 = vpack.c.b16 %v937, %v936
        %v941 = vpack.c.b16 %v939, %v938
        %v945 = vsel %vm315, %v925, 0
        %v948 = vsel %vm315, %v926, 0
        %v951 = vsel %vm315, %v927, 0
        %953 = vmatprep.subr.bf16.mxu0 0
        %954 = vmatpush1.bf16.msra.mxu0 %v940
        %955 = vmatprep.subr.bf16.mxu0 0
        %956 = vmatpush1.bf16.msra.mxu0 %v941
        %957 = vmatprep.subr.bf16.mxu0 0
        %958 = vmatpush1.bf16.msra.mxu0 0
        %959 = vmatprep.subr.bf16.mxu0 0
        %960 = vmatpush1.bf16.msra.mxu0 0
        %961 = vmatprep.subr.bf16.mxu0 0
        %962 = vmatpush1.bf16.msra.mxu0 0
        %963 = vmatprep.subr.bf16.mxu0 0
        %964 = vmatpush1.bf16.msra.mxu0 0
        %965 = vmatprep.subr.bf16.mxu0 0
        %966 = vmatpush1.bf16.msra.mxu0 0
        %967 = vmatprep.subr.bf16.mxu0 0
        %968 = vmatpush1.bf16.msra.mxu0 0
        %969 = vmatprep.subr.bf16.mxu0 0
        %970 = vmatpush1.bf16.msra.mxu0 0
        %971 = vmatprep.subr.bf16.mxu0 0
        %972 = vmatpush1.bf16.msra.mxu0 0
        %973 = vmatprep.subr.bf16.mxu0 0
        %974 = vmatpush1.bf16.msra.mxu0 0
        %975 = vmatprep.subr.bf16.mxu0 0
        %976 = vmatpush1.bf16.msra.mxu0 0
        %977 = vmatprep.subr.bf16.mxu0 0
        %978 = vmatpush1.bf16.msra.mxu0 0
        %979 = vmatprep.subr.bf16.mxu0 0
        %980 = vmatpush1.bf16.msra.mxu0 0
        %981 = vmatprep.subr.bf16.mxu0 0
        %982 = vmatpush1.bf16.msra.mxu0 0
        %983 = vmatprep.subr.bf16.mxu0 0
        %984 = vmatpush1.bf16.msra.mxu0 0
        %985 = vmatprep.mubr.bf16.mxu0 0
        %986 = vmatmul.mubr.bf16.gmra.mrb[0].mxu0 %v945
        %v987 = vpop.f32.mrb[0].mxu0
        %v988 = vadd.f32 %v931, %v987
        %v989 = vpop.f32.mrb[0].mxu0
        %v990 = vpop.f32.mrb[0].mxu0
        %v991 = vadd.f32 %v931, %v990
        %v992 = vpop.f32.mrb[0].mxu0
        %993 = vmatprep.mubr.bf16.mxu0 0
        %994 = vmatmul.mubr.bf16.gmra.mrb[0].mxu0 %v948
        %v995 = vpop.f32.mrb[0].mxu0
        %v996 = vadd.f32 %v931, %v995
        %v997 = vpop.f32.mrb[0].mxu0
        %v998 = vpop.f32.mrb[0].mxu0
        %v999 = vadd.f32 %v931, %v998
        %v1000 = vpop.f32.mrb[0].mxu0
        %1001 = vmatprep.mubr.bf16.mxu0 0
        %1002 = vmatmul.mubr.bf16.gmra.mrb[0].mxu0 %v951
        %v1003 = vpop.f32.mrb[0].mxu0
        %v1004 = vadd.f32 %v931, %v1003
        %v1005 = vpop.f32.mrb[0].mxu0
        %v1006 = vpop.f32.mrb[0].mxu0
        %v1007 = vadd.f32 %v931, %v1006
        %v1008 = vpop.f32.mrb[0].mxu0
        %1009 = vdwg.mxu0
        %v1010 = vmul.f32 %v520, %v988
        %v1011 = vmul.f32 %v523, %v991
        %v1012 = vmul.f32 %v528, %v996
        %v1013 = vmul.f32 %v531, %v999
        %v1014 = vmul.f32 %v536, %v1004
        %v1015 = vmul.f32 %v539, %v1007
        %v1016 = vpack.c.bf16 %v1011, %v1010
        %v1017 = vpack.c.bf16 %v1013, %v1012
        %v1018 = vpack.c.bf16 %v1015, %v1014
        %v1019 = vld [vmem:[%s3] sm:$0xf]
        %v1020 = vld [vmem:[%s3 + $0x4] sm:$0xf]
        %v1023 = vunpack.c.l.b16 %v1019
        %v1024 = vunpack.c.l.b16 %v1020
        %v1025 = vpack.c.b16 %v1024, %v1023
        %vm1026 = vcmask 392192
        %v1028 = vsel %vm1026, %v1025, 0
        %1030 = vmatprep.subr.bf16.mxu0 0
        %1031 = vmatpush1.bf16.msra.mxu0 %v1016
        %1032 = vmatprep.subr.bf16.mxu0 0
        %1033 = vmatpush1.bf16.msra.mxu0 %v1017
        %1034 = vmatprep.subr.bf16.mxu0 0
        %1035 = vmatpush1.bf16.msra.mxu0 %v1018
        %1036 = vmatprep.subr.bf16.mxu0 0
        %1037 = vmatpush1.bf16.msra.mxu0 0
        %1038 = vmatprep.subr.bf16.mxu0 0
        %1039 = vmatpush1.bf16.msra.mxu0 0
        %1040 = vmatprep.subr.bf16.mxu0 0
        %1041 = vmatpush1.bf16.msra.mxu0 0
        %1042 = vmatprep.subr.bf16.mxu0 0
        %1043 = vmatpush1.bf16.msra.mxu0 0
        %1044 = vmatprep.subr.bf16.mxu0 0
        %1045 = vmatpush1.bf16.msra.mxu0 0
        %1046 = vmatprep.subr.bf16.mxu0 0
        %1047 = vmatpush1.bf16.msra.mxu0 0
        %1048 = vmatprep.subr.bf16.mxu0 0
        %1049 = vmatpush1.bf16.msra.mxu0 0
        %1050 = vmatprep.subr.bf16.mxu0 0
        %1051 = vmatpush1.bf16.msra.mxu0 0
        %1052 = vmatprep.subr.bf16.mxu0 0
        %1053 = vmatpush1.bf16.msra.mxu0 0
        %1054 = vmatprep.subr.bf16.mxu0 0
        %1055 = vmatpush1.bf16.msra.mxu0 0
        %1056 = vmatprep.subr.bf16.mxu0 0
        %1057 = vmatpush1.bf16.msra.mxu0 0
        %1058 = vmatprep.subr.bf16.mxu0 0
        %1059 = vmatpush1.bf16.msra.mxu0 0
        %1060 = vmatprep.subr.bf16.mxu0 0
        %1061 = vmatpush1.bf16.msra.mxu0 0
        %1062 = vmatprep.mubr.bf16.mxu0 0
        %1063 = vmatmul.mubr.bf16.gmra.mrb[0].mxu0 %v1028
        %v1064 = vpop.f32.mrb[0].mxu0
        %v1065 = vadd.f32 0.0, %v1064
        %v1066 = vpop.f32.mrb[0].mxu0
        %v1067 = vpop.f32.mrb[0].mxu0
        %v1068 = vadd.f32 0.0, %v1067
        %v1069 = vpop.f32.mrb[0].mxu0
        %1070 = vdwg.mxu0
        %v1071 = vld [vmem:[%s292 + $0x38] sm:$0xf]
        %v1072 = vld [vmem:[%s292 + $0x3c] sm:$0xf]
        %v1073 = vld [vmem:[%s292 + $0x40] sm:$0xf]
        %v1074 = vld [vmem:[%s292 + $0x44] sm:$0xf]
        %v1075 = vld [vmem:[%s292 + $0x48] sm:$0xf]
        %v1076 = vld [vmem:[%s292 + $0x4c] sm:$0xf]
        %v1077 = vld [vmem:[%s292 + $0x50] sm:$0xf]
        %v1078 = vld [vmem:[%s292 + $0x54] sm:$0xf]
        %v1079 = vld [vmem:[%s292 + $0x58] sm:$0xf]
        %v1080 = vld [vmem:[%s292 + $0x5c] sm:$0xf]
        %v1081 = vld [vmem:[%s292 + $0x60] sm:$0xf]
        %v1082 = vld [vmem:[%s292 + $0x64] sm:$0xf]
        %v1083 = vpack.c.bf16 %v1068, %v1065
        %1085 = vrot.lane.b32.xlu0 %v1083, 32
        %v1086 = vpop.permute.xlu0 %1085
        %v1088 = vsel %vm315, %v356, %v1086
        %v1089 = vlaneseq
        %v1090 = vshrl.u32 %v1089, 7
        %v1091 = vsub.s32 6, %v1090
        %v1092 = vrot.slane %v314, %v1091
        %v1101 = vunpack.c.l.b16 %v1075
        %v1102 = vunpack.c.l.b16 %v1076
        %v1103 = vunpack.c.l.b16 %v1077
        %v1104 = vunpack.c.l.b16 %v1078
        %v1105 = vunpack.c.l.b16 %v1079
        %v1106 = vunpack.c.l.b16 %v1080
        %v1107 = vunpack.c.l.b16 %v1081
        %v1108 = vunpack.c.l.b16 %v1082
        %v1109 = vpack.c.b16 %v1102, %v1101
        %v1110 = vpack.c.b16 %v1104, %v1103
        %v1111 = vpack.c.b16 %v1106, %v1105
        %v1112 = vpack.c.b16 %v1108, %v1107
        %vm1117 = vcmask 523264
        %v1118 = vsel %vm1117, %v1088, 0
        %1120 = vmatprep.subr.bf16.mxu0 0
        %1121 = vmatpush1.bf16.msra.mxu0 %v1109
        %1122 = vmatprep.subr.bf16.mxu0 0
        %1123 = vmatpush1.bf16.msra.mxu0 %v1110
        %1124 = vmatprep.subr.bf16.mxu0 0
        %1125 = vmatpush1.bf16.msra.mxu0 %v1111
        %1126 = vmatprep.subr.bf16.mxu0 0
        %1127 = vmatpush1.bf16.msra.mxu0 %v1112
        %1128 = vmatprep.subr.bf16.mxu0 0
        %1129 = vmatpush1.bf16.msra.mxu0 0
        %1130 = vmatprep.subr.bf16.mxu0 0
        %1131 = vmatpush1.bf16.msra.mxu0 0
        %1132 = vmatprep.subr.bf16.mxu0 0
        %1133 = vmatpush1.bf16.msra.mxu0 0
        %1134 = vmatprep.subr.bf16.mxu0 0
        %1135 = vmatpush1.bf16.msra.mxu0 0
        %1136 = vmatprep.subr.bf16.mxu0 0
        %1137 = vmatpush1.bf16.msra.mxu0 0
        %1138 = vmatprep.subr.bf16.mxu0 0
        %1139 = vmatpush1.bf16.msra.mxu0 0
        %1140 = vmatprep.subr.bf16.mxu0 0
        %1141 = vmatpush1.bf16.msra.mxu0 0
        %1142 = vmatprep.subr.bf16.mxu0 0
        %1143 = vmatpush1.bf16.msra.mxu0 0
        %1144 = vmatprep.subr.bf16.mxu0 0
        %1145 = vmatpush1.bf16.msra.mxu0 0
        %1146 = vmatprep.subr.bf16.mxu0 0
        %1147 = vmatpush1.bf16.msra.mxu0 0
        %1148 = vmatprep.subr.bf16.mxu0 0
        %1149 = vmatpush1.bf16.msra.mxu0 0
        %1150 = vmatprep.subr.bf16.mxu0 0
        %1151 = vmatpush1.bf16.msra.mxu0 0
        %1152 = vmatprep.mubr.bf16.mxu0 0
        %1153 = vmatmul.mubr.bf16.gmra.mrb[0].mxu0 %v1118
        %v1154 = vpop.f32.mrb[0].mxu0
        %v1155 = vadd.f32 %v1092, %v1154
        %v1156 = vpop.f32.mrb[0].mxu0
        %v1157 = vpop.f32.mrb[0].mxu0
        %v1158 = vadd.f32 %v1092, %v1157
        %v1159 = vpop.f32.mrb[0].mxu0
        %1160 = vdwg.mxu0
        %v1161 = vmax.f32 %v1155, 0.0
        %v1162 = vmax.f32 %v1158, 0.0
        %v1163 = vpack.c.bf16 %v1162, %v1161
        %v1164 = vlaneseq
        %v1165 = vshrl.u32 %v1164, 7
        %v1166 = vsub.s32 7, %v1165
        %v1167 = vrot.slane %v314, %v1166
        %v1172 = vunpack.c.l.b16 %v1071
        %v1173 = vunpack.c.l.b16 %v1072
        %v1174 = vunpack.c.l.b16 %v1073
        %v1175 = vunpack.c.l.b16 %v1074
        %v1176 = vpack.c.b16 %v1173, %v1172
        %v1177 = vpack.c.b16 %v1175, %v1174
        %v1181 = vsel %vm315, %v1163, 0
        %1183 = vmatprep.subr.bf16.mxu0 0
        %1184 = vmatpush1.bf16.msra.mxu0 %v1176
        %1185 = vmatprep.subr.bf16.mxu0 0
        %1186 = vmatpush1.bf16.msra.mxu0 %v1177
        %1187 = vmatprep.subr.bf16.mxu0 0
        %1188 = vmatpush1.bf16.msra.mxu0 0
        %1189 = vmatprep.subr.bf16.mxu0 0
        %1190 = vmatpush1.bf16.msra.mxu0 0
        %1191 = vmatprep.subr.bf16.mxu0 0
        %1192 = vmatpush1.bf16.msra.mxu0 0
        %1193 = vmatprep.subr.bf16.mxu0 0
        %1194 = vmatpush1.bf16.msra.mxu0 0
        %1195 = vmatprep.subr.bf16.mxu0 0
        %1196 = vmatpush1.bf16.msra.mxu0 0
        %1197 = vmatprep.subr.bf16.mxu0 0
        %1198 = vmatpush1.bf16.msra.mxu0 0
        %1199 = vmatprep.subr.bf16.mxu0 0
        %1200 = vmatpush1.bf16.msra.mxu0 0
        %1201 = vmatprep.subr.bf16.mxu0 0
        %1202 = vmatpush1.bf16.msra.mxu0 0
        %1203 = vmatprep.subr.bf16.mxu0 0
        %1204 = vmatpush1.bf16.msra.mxu0 0
        %1205 = vmatprep.subr.bf16.mxu0 0
        %1206 = vmatpush1.bf16.msra.mxu0 0
        %1207 = vmatprep.subr.bf16.mxu0 0
        %1208 = vmatpush1.bf16.msra.mxu0 0
        %1209 = vmatprep.subr.bf16.mxu0 0
        %1210 = vmatpush1.bf16.msra.mxu0 0
        %1211 = vmatprep.subr.bf16.mxu0 0
        %1212 = vmatpush1.bf16.msra.mxu0 0
        %1213 = vmatprep.subr.bf16.mxu0 0
        %1214 = vmatpush1.bf16.msra.mxu0 0
        %1215 = vmatprep.mubr.bf16.mxu0 0
        %1216 = vmatmul.mubr.bf16.gmra.mrb[0].mxu0 %v1181
        %v1217 = vpop.f32.mrb[0].mxu0
        %v1218 = vadd.f32 %v1167, %v1217
        %v1219 = vpop.f32.mrb[0].mxu0
        %v1220 = vpop.f32.mrb[0].mxu0
        %v1221 = vadd.f32 %v1167, %v1220
        %v1222 = vpop.f32.mrb[0].mxu0
        %1223 = vdwg.mxu0
        %v1224 = vadd.f32 %v1218, %v312
        %v1225 = vadd.f32 %v1221, %v313
        %1226 = vst.msk [vmem:[#allocation2] sm:$0xff] %vm315, %v1224
        %1227 = vst.msk [vmem:[#allocation2 + $0x8] sm:$0xff] %vm315, %v1225
        // Predicated region
        $region53: #{smooth_conv_block.1} parent=47 // pred_check
          %p1228 = pneg %p194
        $region54: #{smooth_conv_block.1} parent=47 // pred_check_branch
          %1230 = sbr.rel (%p1228) target = $region56
        $region55: #{smooth_conv_block.1} parent=47 // pred_region
          %s1232 = ssub.s32 256, 256
          %1233 = vsyncadd [#allocation3], %s1232
          %s1234 = sshll.u32 [#allocation2], 4
          %s1235 = int_to_ptr.vmem [resolvable:$true] %s1234
          %1240 = dma.vmem_to_hbm [thread:$0]  %s1235, 256, %s7, [#allocation3], 128, 128, 8
        $region56: #{smooth_conv_block.1} parent=47 // pred_fallthru
          _
        // Predicated region
        $region57: #{smooth_conv_block.1} parent=47 // pred_check
          %p1241 = pneg %p194
        $region58: #{smooth_conv_block.1} parent=47 // pred_check_branch
          %1243 = sbr.rel (%p1241) target = $region60
        $region59: #{smooth_conv_block.1} parent=47 // pred_region
          %1244 = dma.done [#allocation3], 256
        $region60: #{smooth_conv_block.1} parent=47 // pred_fallthru
          _
      $region48: #{smooth_conv_block.1} parent=5 // pred_fallthru
        _
      %p1245 = scmp.le.s32.totalorder 2, %s14
      // Predicated region
      $region61: #{smooth_conv_block.1} parent=5 // pred_check
        %p1246 = pneg %p1245
      $region62: #{smooth_conv_block.1} parent=5 // pred_check_branch
        %1248 = sbr.rel (%p1246) target = $region64
      $region63: #{smooth_conv_block.1} parent=5 // pred_region
        %s1249 = ssub.s32 %s14, 2
      $region64: #{smooth_conv_block.1} parent=5 // pred_fallthru
        _
    $region6: #{smooth_conv_block.1} parent=1 // loop_footer
      %s18 = sadd.s32 1, %s14
    $region7: #{smooth_conv_block.1} parent=1 // loop_footer_branch
      %13 = sbr.rel target = $region3
    $region8: #{smooth_conv_block.1} parent=1 // loop_exit
      _
    %1250 = vsyncpa [#allocation3], 1
    %s1251 = scalar_lea.sflag [#allocation3], 1
    %1252 = vsyncpa %s1251, 1

</llo_original>
